<compile_context>
chip_gen: v5e
topology: v5e:2x2
jax: 0.10.0
libtpu: 0.0.40
codegen_flags: <defaults>
</compile_context>

<pallas_src>
import functools

import jax
import jax.numpy as jnp
from jax.experimental import pallas as pl
from jax.experimental.pallas import tpu as pltpu

EPS = 1e-5            # PyTorch BatchNorm2d default eps
LANE = 128
SUBLANE = 8
TM_MAX = 512          # rows per tile
TK_MAX = 512          # contraction tile
TC_MAX = 256          # output-channel tile (the "parallel" axis)
VMEM_LIMIT_BYTES = 48 * 1024 * 1024   # safe for v7x; v5e/v6e could go higher


def _round_up(n, m):
    return (n + m - 1) // m * m


def _cdiv(a, b):
    return -(-a // b)


def _tile(total, max_tile, align):
    """(num_tiles, tile, padded_total) with minimal padding (review fix)."""
    total_a = _round_up(max(total, 1), align)
    n = max(1, _cdiv(total_a, max_tile))
    t = _round_up(_cdiv(total_a, n), align)
    n = _cdiv(total_a, t)
    return n, t, n * t


# ---------------------------------------------------------------------------
# Kernel A: tiled matmul + per-channel sum / sum-of-squares (pre-BN stats).
# grid = (c, m, k); c is megacore-parallel, m/k are sequential.
# y is written exactly once (at the last k step) -- no recompute, no placeholders.
# ---------------------------------------------------------------------------
def _matmul_stats_kernel(x_ref, w_ref, y_ref, sum_ref, ssq_ref, acc_ref):
    m = pl.program_id(1)
    k = pl.program_id(2)
    nk = pl.num_programs(2)

    @pl.when(k == 0)
    def _():
        acc_ref[...] = jnp.zeros_like(acc_ref)

    acc_ref[...] += jnp.dot(x_ref[...], w_ref[...],
                            preferred_element_type=jnp.float32)

    @pl.when(jnp.logical_and(k == nk - 1, m == 0))
    def _():
        sum_ref[...] = jnp.zeros_like(sum_ref)
        ssq_ref[...] = jnp.zeros_like(ssq_ref)

    @pl.when(k == nk - 1)
    def _():
        y = acc_ref[...]
        y_ref[...] = y
        # Zero-padded input rows give y == 0 here (no bias), so the global
        # statistics over the real M rows stay exact.
        sum_ref[...] += jnp.sum(y, axis=0, keepdims=True)
        ssq_ref[...] += jnp.sum(y * y, axis=0, keepdims=True)


def _matmul_stats(x2d, w2d):
    """y = x @ w (f32), plus per-channel sum and sum-of-squares of y."""
    M, K = x2d.shape
    K2, C = w2d.shape
    assert K == K2
    nm, tm, Mp = _tile(M, TM_MAX, SUBLANE)
    nk, tk, Kp = _tile(K, TK_MAX, LANE)
    nc, tc, Cp = _tile(C, TC_MAX, LANE)

    xp = jnp.pad(x2d.astype(jnp.float32), ((0, Mp - M), (0, Kp - K)))
    wp = jnp.pad(w2d.astype(jnp.float32), ((0, Kp - K), (0, Cp - C)))

    y, s, q = pl.pallas_call(
        _matmul_stats_kernel,
        out_shape=(
            jax.ShapeDtypeStruct((Mp, Cp), jnp.float32),
            jax.ShapeDtypeStruct((1, Cp), jnp.float32),
            jax.ShapeDtypeStruct((1, Cp), jnp.float32),
        ),
        grid=(nc, nm, nk),
        in_specs=[
            pl.BlockSpec((tm, tk), lambda c, m, k: (m, k)),
            pl.BlockSpec((tk, tc), lambda c, m, k: (k, c)),
        ],
        out_specs=[
            pl.BlockSpec((tm, tc), lambda c, m, k: (m, c)),
            pl.BlockSpec((1, tc), lambda c, m, k: (0, c)),
            pl.BlockSpec((1, tc), lambda c, m, k: (0, c)),
        ],
        scratch_shapes=[pltpu.VMEM((tm, tc), jnp.float32)],
        compiler_params=pltpu.CompilerParams(
            dimension_semantics=("parallel", "arbitrary", "arbitrary"),
            vmem_limit_bytes=VMEM_LIMIT_BYTES,
        ),
    )(xp, wp)
    return y, s, q, (nm, tm, nc, tc)


def _bn_scale_shift(s, q, gamma, beta, m_real, cp):
    """Tiny (1, Cp) math: fold training-mode BN into y*scale + shift."""
    # TODO(synk): E[y^2]-E[y]^2 can lose precision for very large M; use a
    # shifted / hierarchical combine if N*H*W grows into the millions.
    c = gamma.shape[0]
    gp = jnp.pad(gamma, (0, cp - c)).reshape(1, cp)
    bp = jnp.pad(beta, (0, cp - c)).reshape(1, cp)
    mean = s / float(m_real)
    var = jnp.maximum(q / float(m_real) - mean * mean, 0.0)
    rstd = jax.lax.rsqrt(var + EPS)
    scale = gp * rstd
    shift = bp - mean * scale
    return scale, shift


# ---------------------------------------------------------------------------
# Kernel B: affine (+ residual | + second affine) + ReLU, purely elementwise.
# ---------------------------------------------------------------------------
def _affine_relu_kernel(y_ref, sc_ref, sh_ref, o_ref):
    o_ref[...] = jnp.maximum(y_ref[...] * sc_ref[...] + sh_ref[...], 0.0)


def _affine_add_relu_kernel(y_ref, sc_ref, sh_ref, r_ref, o_ref):
    o_ref[...] = jnp.maximum(
        y_ref[...] * sc_ref[...] + sh_ref[...] + r_ref[...], 0.0)


def _affine2_relu_kernel(y_ref, sc_ref, sh_ref, y2_ref, sc2_ref, sh2_ref, o_ref):
    o_ref[...] = jnp.maximum(
        y_ref[...] * sc_ref[...] + sh_ref[...]
        + y2_ref[...] * sc2_ref[...] + sh2_ref[...], 0.0)


def _apply_affine(y, scale, shift, *, meta, residual=None,
                  y2=None, scale2=None, shift2=None):
    nm, tm, nc, tc = meta
    Mp, Cp = y.shape
    row_spec = pl.BlockSpec((tm, tc), lambda c, m: (m, c))
    vec_spec = pl.BlockSpec((1, tc), lambda c, m: (0, c))

    if y2 is not None:
        kernel = _affine2_relu_kernel
        inputs = (y, scale, shift, y2, scale2, shift2)
        in_specs = [row_spec, vec_spec, vec_spec, row_spec, vec_spec, vec_spec]
    elif residual is not None:
        kernel = _affine_add_relu_kernel
        inputs = (y, scale, shift, residual)
        in_specs = [row_spec, vec_spec, vec_spec, row_spec]
    else:
        kernel = _affine_relu_kernel
        inputs = (y, scale, shift)
        in_specs = [row_spec, vec_spec, vec_spec]

    return pl.pallas_call(
        kernel,
        out_shape=jax.ShapeDtypeStruct((Mp, Cp), jnp.float32),
        grid=(nc, nm),
        in_specs=in_specs,
        out_specs=row_spec,
        compiler_params=pltpu.CompilerParams(
            dimension_semantics=("parallel", "parallel"),
            vmem_limit_bytes=VMEM_LIMIT_BYTES,
        ),
    )(*inputs)


# ---------------------------------------------------------------------------
# Plain-JAX glue: im2col and block-diagonal (grouped) weight re-layout
# ---------------------------------------------------------------------------
def _im2col(x, k, stride, pad, dilation):
    # x: (N, H, W, C) -> patches (N, Ho, Wo, k*k*C), columns ordered (kh, kw, c)
    N, H, W, C = x.shape
    xp = jnp.pad(x, ((0, 0), (pad, pad), (pad, pad), (0, 0)))
    Ho = (H + 2 * pad - dilation * (k - 1) - 1) // stride + 1
    Wo = (W + 2 * pad - dilation * (k - 1) - 1) // stride + 1
    cols = []
    for i in range(k):
        for j in range(k):
            cols.append(
                xp[:, i * dilation: i * dilation + stride * (Ho - 1) + 1: stride,
                      j * dilation: j * dilation + stride * (Wo - 1) + 1: stride, :]
            )
    return jnp.concatenate(cols, axis=-1), Ho, Wo


def _block_diag_weight(w2, k, width, groups):
    # w2: (width, width//groups, k, k) grouped OIHW  ->  (k*k*width, width)
    cpg = width // groups
    big = jnp.zeros((k, k, width, width), jnp.float32)
    for g in range(groups):
        wg = jnp.transpose(w2[g * cpg:(g + 1) * cpg], (2, 3, 1, 0))  # (k,k,in,out)
        big = big.at[:, :, g * cpg:(g + 1) * cpg, g * cpg:(g + 1) * cpg].set(wg)
    return big.reshape(k * k * width, width)


# ---------------------------------------------------------------------------
# BottleNeck forward (Pallas path)
# ---------------------------------------------------------------------------
def bottleneck_forward(x_nchw, p, *, c_out, kernel_size, stride, groups, dilation):
    N, c_in, H, W = x_nchw.shape
    width = c_out * groups
    x = jnp.transpose(x_nchw, (0, 2, 3, 1)).astype(jnp.float32)   # NHWC

    # ---- conv1: 1x1 (no bias) + BN + ReLU -----------------------------------
    M1 = N * H * W
    w1 = p["w1"].reshape(width, c_in).T
    y1, s1, q1, meta1 = _matmul_stats(x.reshape(M1, c_in), w1)
    sc1, sh1 = _bn_scale_shift(s1, q1, p["g1"], p["b1"], M1, y1.shape[1])
    h1 = _apply_affine(y1, sc1, sh1, meta=meta1)[:M1, :width]
    h1 = h1.reshape(N, H, W, width)

    # ---- conv2: kxk grouped conv as ONE matmul vs block-diagonal weight -----
    pad = (kernel_size - 1) // 2 * dilation
    patches, Ho, Wo = _im2col(h1, kernel_size, stride, pad, dilation)
    M2 = N * Ho * Wo
    patches = patches.reshape(M2, kernel_size * kernel_size * width)
    w2 = _block_diag_weight(p["w2"], kernel_size, width, groups)
    y2, s2, q2, meta2 = _matmul_stats(patches, w2)
    sc2, sh2 = _bn_scale_shift(s2, q2, p["g2"], p["b2"], M2, y2.shape[1])
    h2 = _apply_affine(y2, sc2, sh2, meta=meta2)[:M2, :width]

    # ---- conv3 + bn3 (+ downsample conv + BN) + residual + ReLU -------------
    # Conv biases (b3c, bd) are cancelled exactly by training-mode BN -> dropped.
    w3 = p["w3"].reshape(c_out, width).T
    y3, s3, q3, meta3 = _matmul_stats(h2, w3)
    sc3, sh3 = _bn_scale_shift(s3, q3, p["g3"], p["b3"], M2, y3.shape[1])
    Mp3, Cp3 = y3.shape

    if c_in != c_out or stride != 1:
        xs = x[:, ::stride, ::stride, :].reshape(M2, c_in)
        wd = p["wd"].reshape(c_out, c_in).T
        yd, sd, qd, _ = _matmul_stats(xs, wd)     # same (Mp3, Cp3) padding
        scd, shd = _bn_scale_shift(sd, qd, p["gd"], p["betad"], M2, Cp3)
        out = _apply_affine(y3, sc3, sh3, meta=meta3,
                            y2=yd, scale2=scd, shift2=shd)
    else:
        resp = jnp.pad(x.reshape(M2, c_in), ((0, Mp3 - M2), (0, Cp3 - c_in)))
        out = _apply_affine(y3, sc3, sh3, meta=meta3, residual=resp)

    out = out[:M2, :c_out].reshape(N, Ho, Wo, c_out)
    return jnp.transpose(out, (0, 3, 1, 2))       # back to NCHW


# ---------------------------------------------------------------------------
# Pure-JAX reference (mirrors the PyTorch module, training-mode BatchNorm)
# ---------------------------------------------------------------------------
def _ref_bn_train(x, g, b):
    mean = jnp.mean(x, axis=(0, 2, 3), keepdims=True)
    var = jnp.mean((x - mean) ** 2, axis=(0, 2, 3), keepdims=True)
    return g[None, :, None, None] * (x - mean) * jax.lax.rsqrt(var + EPS) \
        + b[None, :, None, None]


def _ref_conv(x, w, b, stride, pad, dilation, groups):
    y = jax.lax.conv_general_dilated(
        x, w, (stride, stride), [(pad, pad), (pad, pad)],
        rhs_dilation=(dilation, dilation),
        dimension_numbers=("NCHW", "OIHW", "NCHW"),
        feature_group_count=groups,
        precision=jax.lax.Precision.HIGHEST,
    )
    if b is not None:
        y = y + b[None, :, None, None]
    return y


def bottleneck_ref(x, p, *, c_out, kernel_size, stride, groups, dilation):
    residual = x
    out = jax.nn.relu(_ref_bn_train(_ref_conv(x, p["w1"], None, 1, 0, 1, 1),
                                    p["g1"], p["b1"]))
    pad = (kernel_size - 1) // 2 * dilation
    out = jax.nn.relu(_ref_bn_train(
        _ref_conv(out, p["w2"], None, stride, pad, dilation, groups),
        p["g2"], p["b2"]))
    out = _ref_bn_train(_ref_conv(out, p["w3"], p["b3c"], 1, 0, 1, 1),
                        p["g3"], p["b3"])
    if x.shape[1] != c_out or stride != 1:
        residual = _ref_bn_train(_ref_conv(x, p["wd"], p["bd"], stride, 0, 1, 1),
                                 p["gd"], p["betad"])
    return jax.nn.relu(out + residual)


# ---------------------------------------------------------------------------
# Deterministic parameter init (synthetic, not a checkpoint)
# ---------------------------------------------------------------------------
def init_params(key, c_in, c_out, kernel_size, groups):
    width = c_out * groups
    ks = jax.random.split(key, 16)
    f32 = jnp.float32
    return {
        # conv1 (1x1, no bias) + bn1
        "w1": 0.3 * jax.random.normal(ks[0], (width, c_in, 1, 1), f32),
        "g1": 1.0 + 0.1 * jax.random.normal(ks[1], (width,), f32),
        "b1": 0.1 * jax.random.normal(ks[2], (width,), f32),
        # conv2 (kxk, grouped, no bias) + bn2
        "w2": 0.3 * jax.random.normal(
            ks[3], (width, width // groups, kernel_size, kernel_size), f32),
        "g2": 1.0 + 0.1 * jax.random.normal(ks[4], (width,), f32),
        "b2": 0.1 * jax.random.normal(ks[5], (width,), f32),
        # conv3 (1x1, bias=True by PyTorch default) + bn3
        "w3": 0.3 * jax.random.normal(ks[6], (c_out, width, 1, 1), f32),
        "b3c": 0.1 * jax.random.normal(ks[7], (c_out,), f32),
        "g3": 1.0 + 0.1 * jax.random.normal(ks[8], (c_out,), f32),
        "b3": 0.1 * jax.random.normal(ks[9], (c_out,), f32),
        # downsample conv (1x1, bias=True) + bn
        "wd": 0.3 * jax.random.normal(ks[10], (c_out, c_in, 1, 1), f32),
        "bd": 0.1 * jax.random.normal(ks[11], (c_out,), f32),
        "gd": 1.0 + 0.1 * jax.random.normal(ks[12], (c_out,), f32),
        "betad": 0.1 * jax.random.normal(ks[13], (c_out,), f32),
    }


if __name__ == "__main__":
    configs = [
        # (N, c_in, H, W, c_out, kernel_size, stride, groups, dilation)
        (2, 4, 16, 16, 8, 3, 2, 1, 1),   # downsample path (stride 2, c_in != c_out)
        (2, 8, 16, 16, 8, 3, 1, 2, 1),   # identity residual + grouped conv2
    ]
    key = jax.random.PRNGKey(0)
    for idx, (N, c_in, H, W, c_out, ksz, stride, groups, dil) in enumerate(configs):
        key, kx, kp = jax.random.split(key, 3)
        x = jax.random.normal(kx, (N, c_in, H, W), jnp.float32)
        params = init_params(kp, c_in, c_out, ksz, groups)

        run = jax.jit(functools.partial(
            bottleneck_forward, c_out=c_out, kernel_size=ksz,
            stride=stride, groups=groups, dilation=dil))
        out = jax.block_until_ready(run(x, params))

        ref = jax.block_until_ready(bottleneck_ref(
            x, params, c_out=c_out, kernel_size=ksz, stride=stride,
            groups=groups, dilation=dil))

        assert out.shape == ref.shape, (out.shape, ref.shape)
        max_err = float(jnp.max(jnp.abs(out - ref)))
        # f32 matmuls typically give max-abs error ~1e-4; the 5e-2 bound also
        # guards backends that lower f32 dots with reduced-precision MXU passes.
        assert max_err < 5e-2, f"config {idx}: max abs error vs reference: {max_err}"
    print("KERNEL_OK")
</pallas_src>

<mosaic_0001>
module attributes {stable_mosaic.version = 11 : i64} {
  func.func @_matmul_stats_kernel(%arg0: i32, %arg1: i32, %arg2: i32, %arg3: memref<512x128xf32, #tpu.memory_space<vmem>>, %arg4: memref<128x128xf32, #tpu.memory_space<vmem>>, %arg5: memref<512x128xf32, #tpu.memory_space<vmem>>, %arg6: memref<1x128xf32, #tpu.memory_space<vmem>>, %arg7: memref<1x128xf32, #tpu.memory_space<vmem>>, %arg8: memref<512x128xf32, #tpu.memory_space<vmem>>) attributes {dimension_semantics = [#tpu.dimension_semantics<parallel>, #tpu.dimension_semantics<arbitrary>, #tpu.dimension_semantics<arbitrary>], iteration_bounds = array<i64: 1, 1, 1>, scalar_prefetch = 0 : i64, scratch_operands = 1 : i64, tpu.core_type = #tpu.core_type<tc>, window_params = [{transform_indices = @transform_0, window_bounds = array<i64: 512, 128>}, {transform_indices = @transform_1, window_bounds = array<i64: 128, 128>}, {transform_indices = @transform_2, window_bounds = array<i64: 512, 128>}, {transform_indices = @transform_3, window_bounds = array<i64: 1, 128>}, {transform_indices = @transform_4, window_bounds = array<i64: 1, 128>}]} {
    %c0_i32 = arith.constant 0 : i32
    %0 = arith.cmpi eq, %arg2, %c0_i32 : i32
    %1 = arith.extui %0 : i1 to i32
    %c0_i32_0 = arith.constant 0 : i32
    %2 = arith.cmpi ne, %1, %c0_i32_0 : i32
    scf.if %2 {
      %cst_13 = arith.constant 0.000000e+00 : f32
      %17 = vector.broadcast %cst_13 : f32 to vector<512x128xf32>
      %c0_14 = arith.constant 0 : index
      %c0_15 = arith.constant 0 : index
      %18 = vector.load %arg8[%c0_14, %c0_15] : memref<512x128xf32, #tpu.memory_space<vmem>>, vector<512x128xf32>
      tpu.vector_store %arg8[%c0_14, %c0_15], %17 {strides = array<i32>} : memref<512x128xf32, #tpu.memory_space<vmem>>, vector<512x128xf32>,
    } else {
    }
    %c0 = arith.constant 0 : index
    %c0_1 = arith.constant 0 : index
    %3 = vector.load %arg8[%c0, %c0_1] : memref<512x128xf32, #tpu.memory_space<vmem>>, vector<512x128xf32>
    %c0_2 = arith.constant 0 : index
    %c0_3 = arith.constant 0 : index
    %4 = vector.load %arg3[%c0_2, %c0_3] : memref<512x128xf32, #tpu.memory_space<vmem>>, vector<512x128xf32>
    %c0_4 = arith.constant 0 : index
    %c0_5 = arith.constant 0 : index
    %5 = vector.load %arg4[%c0_4, %c0_5] : memref<128x128xf32, #tpu.memory_space<vmem>>, vector<128x128xf32>
    %cst = arith.constant dense<0.000000e+00> : vector<512x128xf32>
    %6 = tpu.matmul %4, %5, %cst {dimension_numbers = #tpu.dot_dimension_numbers<[1], [0], [0], [1], [0, 0, 1, 1], [], []>} : vector<512x128xf32>, vector<128x128xf32>, vector<512x128xf32> -> vector<512x128xf32>
    %7 = arith.addf %3, %6 : vector<512x128xf32>
    %c0_6 = arith.constant 0 : index
    %c0_7 = arith.constant 0 : index
    %8 = vector.load %arg8[%c0_6, %c0_7] : memref<512x128xf32, #tpu.memory_space<vmem>>, vector<512x128xf32>
    tpu.vector_store %arg8[%c0_6, %c0_7], %7 {strides = array<i32>} : memref<512x128xf32, #tpu.memory_space<vmem>>, vector<512x128xf32>,
    %c0_i32_8 = arith.constant 0 : i32
    %9 = arith.cmpi eq, %arg2, %c0_i32_8 : i32
    %c0_i32_9 = arith.constant 0 : i32
    %10 = arith.cmpi eq, %arg1, %c0_i32_9 : i32
    %11 = arith.andi %9, %10 : i1
    %12 = arith.extui %11 : i1 to i32
    %c0_i32_10 = arith.constant 0 : i32
    %13 = arith.cmpi ne, %12, %c0_i32_10 : i32
    scf.if %13 {
      %cst_13 = arith.constant 0.000000e+00 : f32
      %17 = vector.broadcast %cst_13 : f32 to vector<1x128xf32>
      %c0_14 = arith.constant 0 : index
      %c0_15 = arith.constant 0 : index
      %18 = vector.load %arg6[%c0_14, %c0_15] : memref<1x128xf32, #tpu.memory_space<vmem>>, vector<1x128xf32>
      tpu.vector_store %arg6[%c0_14, %c0_15], %17 {strides = array<i32>} : memref<1x128xf32, #tpu.memory_space<vmem>>, vector<1x128xf32>,
      %cst_16 = arith.constant 0.000000e+00 : f32
      %19 = vector.broadcast %cst_16 : f32 to vector<1x128xf32>
      %c0_17 = arith.constant 0 : index
      %c0_18 = arith.constant 0 : index
      %20 = vector.load %arg7[%c0_17, %c0_18] : memref<1x128xf32, #tpu.memory_space<vmem>>, vector<1x128xf32>
      tpu.vector_store %arg7[%c0_17, %c0_18], %19 {strides = array<i32>} : memref<1x128xf32, #tpu.memory_space<vmem>>, vector<1x128xf32>,
    } else {
    }
    %c0_i32_11 = arith.constant 0 : i32
    %14 = arith.cmpi eq, %arg2, %c0_i32_11 : i32
    %15 = arith.extui %14 : i1 to i32
    %c0_i32_12 = arith.constant 0 : i32
    %16 = arith.cmpi ne, %15, %c0_i32_12 : i32
    scf.if %16 {
      %c0_13 = arith.constant 0 : index
      %c0_14 = arith.constant 0 : index
      %17 = vector.load %arg8[%c0_13, %c0_14] : memref<512x128xf32, #tpu.memory_space<vmem>>, vector<512x128xf32>
      %c0_15 = arith.constant 0 : index
      %c0_16 = arith.constant 0 : index
      %18 = vector.load %arg5[%c0_15, %c0_16] : memref<512x128xf32, #tpu.memory_space<vmem>>, vector<512x128xf32>
      tpu.vector_store %arg5[%c0_15, %c0_16], %17 {strides = array<i32>} : memref<512x128xf32, #tpu.memory_space<vmem>>, vector<512x128xf32>,
      %c0_17 = arith.constant 0 : index
      %c0_18 = arith.constant 0 : index
      %19 = vector.load %arg6[%c0_17, %c0_18] : memref<1x128xf32, #tpu.memory_space<vmem>>, vector<1x128xf32>
      %cst_19 = arith.constant dense<0.000000e+00> : vector<128xf32>
      %20 = vector.multi_reduction <add>, %17, %cst_19 [0] : vector<512x128xf32> to vector<128xf32>
      %21 = vector.shape_cast %20 : vector<128xf32> to vector<1x128xf32>
      %22 = arith.addf %19, %21 : vector<1x128xf32>
      %c0_20 = arith.constant 0 : index
      %c0_21 = arith.constant 0 : index
      %23 = vector.load %arg6[%c0_20, %c0_21] : memref<1x128xf32, #tpu.memory_space<vmem>>, vector<1x128xf32>
      tpu.vector_store %arg6[%c0_20, %c0_21], %22 {strides = array<i32>} : memref<1x128xf32, #tpu.memory_space<vmem>>, vector<1x128xf32>,
      %c0_22 = arith.constant 0 : index
      %c0_23 = arith.constant 0 : index
      %24 = vector.load %arg7[%c0_22, %c0_23] : memref<1x128xf32, #tpu.memory_space<vmem>>, vector<1x128xf32>
      %25 = arith.mulf %17, %17 : vector<512x128xf32>
      %cst_24 = arith.constant dense<0.000000e+00> : vector<128xf32>
      %26 = vector.multi_reduction <add>, %25, %cst_24 [0] : vector<512x128xf32> to vector<128xf32>
      %27 = vector.shape_cast %26 : vector<128xf32> to vector<1x128xf32>
      %28 = arith.addf %24, %27 : vector<1x128xf32>
      %c0_25 = arith.constant 0 : index
      %c0_26 = arith.constant 0 : index
      %29 = vector.load %arg7[%c0_25, %c0_26] : memref<1x128xf32, #tpu.memory_space<vmem>>, vector<1x128xf32>
      tpu.vector_store %arg7[%c0_25, %c0_26], %28 {strides = array<i32>} : memref<1x128xf32, #tpu.memory_space<vmem>>, vector<1x128xf32>,
    } else {
    }
    return
  }
  func.func @transform_0(%arg0: i32, %arg1: i32, %arg2: i32) -> (i32, i32) {
    %c0_i32 = arith.constant 0 : i32
    return %arg1, %arg2 : i32, i32
  }
  func.func @transform_1(%arg0: i32, %arg1: i32, %arg2: i32) -> (i32, i32) {
    %c0_i32 = arith.constant 0 : i32
    return %arg2, %arg0 : i32, i32
  }
  func.func @transform_2(%arg0: i32, %arg1: i32, %arg2: i32) -> (i32, i32) {
    %c0_i32 = arith.constant 0 : i32
    return %arg1, %arg0 : i32, i32
  }
  func.func @transform_3(%arg0: i32, %arg1: i32, %arg2: i32) -> (i32, i32) {
    %c0_i32 = arith.constant 0 : i32
    %c0_i32_0 = arith.constant 0 : i32
    return %c0_i32, %arg0 : i32, i32
  }
  func.func @transform_4(%arg0: i32, %arg1: i32, %arg2: i32) -> (i32, i32) {
    %c0_i32 = arith.constant 0 : i32
    %c0_i32_0 = arith.constant 0 : i32
    return %c0_i32, %arg0 : i32, i32
  }
}

module attributes {stable_mosaic.version = 11 : i64} {
  func.func @_affine_relu_kernel(%arg0: i32, %arg1: i32, %arg2: memref<512x128xf32, #tpu.memory_space<vmem>>, %arg3: memref<1x128xf32, #tpu.memory_space<vmem>>, %arg4: memref<1x128xf32, #tpu.memory_space<vmem>>, %arg5: memref<512x128xf32, #tpu.memory_space<vmem>>) attributes {dimension_semantics = [#tpu.dimension_semantics<parallel>, #tpu.dimension_semantics<parallel>], iteration_bounds = array<i64: 1, 1>, scalar_prefetch = 0 : i64, scratch_operands = 0 : i64, tpu.core_type = #tpu.core_type<tc>, window_params = [{transform_indices = @transform_0, window_bounds = array<i64: 512, 128>}, {transform_indices = @transform_1, window_bounds = array<i64: 1, 128>}, {transform_indices = @transform_2, window_bounds = array<i64: 1, 128>}, {transform_indices = @transform_3, window_bounds = array<i64: 512, 128>}]} {
    %c0 = arith.constant 0 : index
    %c0_0 = arith.constant 0 : index
    %0 = vector.load %arg2[%c0, %c0_0] : memref<512x128xf32, #tpu.memory_space<vmem>>, vector<512x128xf32>
    %c0_1 = arith.constant 0 : index
    %c0_2 = arith.constant 0 : index
    %1 = vector.load %arg3[%c0_1, %c0_2] : memref<1x128xf32, #tpu.memory_space<vmem>>, vector<1x128xf32>
    %2 = vector.broadcast %1 : vector<1x128xf32> to vector<512x128xf32>
    %3 = arith.mulf %0, %2 : vector<512x128xf32>
    %c0_3 = arith.constant 0 : index
    %c0_4 = arith.constant 0 : index
    %4 = vector.load %arg4[%c0_3, %c0_4] : memref<1x128xf32, #tpu.memory_space<vmem>>, vector<1x128xf32>
    %5 = vector.broadcast %4 : vector<1x128xf32> to vector<512x128xf32>
    %6 = arith.addf %3, %5 : vector<512x128xf32>
    %cst = arith.constant 0.000000e+00 : f32
    %7 = vector.broadcast %cst : f32 to vector<512x128xf32>
    %8 = arith.maximumf %6, %7 : vector<512x128xf32>
    %c0_5 = arith.constant 0 : index
    %c0_6 = arith.constant 0 : index
    %9 = vector.load %arg5[%c0_5, %c0_6] : memref<512x128xf32, #tpu.memory_space<vmem>>, vector<512x128xf32>
    tpu.vector_store %arg5[%c0_5, %c0_6], %8 {strides = array<i32>} : memref<512x128xf32, #tpu.memory_space<vmem>>, vector<512x128xf32>,
    return
  }
  func.func @transform_0(%arg0: i32, %arg1: i32) -> (i32, i32) {
    %c0_i32 = arith.constant 0 : i32
    return %arg1, %arg0 : i32, i32
  }
  func.func @transform_1(%arg0: i32, %arg1: i32) -> (i32, i32) {
    %c0_i32 = arith.constant 0 : i32
    %c0_i32_0 = arith.constant 0 : i32
    return %c0_i32, %arg0 : i32, i32
  }
  func.func @transform_2(%arg0: i32, %arg1: i32) -> (i32, i32) {
    %c0_i32 = arith.constant 0 : i32
    %c0_i32_0 = arith.constant 0 : i32
    return %c0_i32, %arg0 : i32, i32
  }
  func.func @transform_3(%arg0: i32, %arg1: i32) -> (i32, i32) {
    %c0_i32 = arith.constant 0 : i32
    return %arg1, %arg0 : i32, i32
  }
}

module attributes {stable_mosaic.version = 11 : i64} {
  func.func @_matmul_stats_kernel(%arg0: i32, %arg1: i32, %arg2: i32, %arg3: memref<128x128xf32, #tpu.memory_space<vmem>>, %arg4: memref<128x128xf32, #tpu.memory_space<vmem>>, %arg5: memref<128x128xf32, #tpu.memory_space<vmem>>, %arg6: memref<1x128xf32, #tpu.memory_space<vmem>>, %arg7: memref<1x128xf32, #tpu.memory_space<vmem>>, %arg8: memref<128x128xf32, #tpu.memory_space<vmem>>) attributes {dimension_semantics = [#tpu.dimension_semantics<parallel>, #tpu.dimension_semantics<arbitrary>, #tpu.dimension_semantics<arbitrary>], iteration_bounds = array<i64: 1, 1, 1>, scalar_prefetch = 0 : i64, scratch_operands = 1 : i64, tpu.core_type = #tpu.core_type<tc>, window_params = [{transform_indices = @transform_0, window_bounds = array<i64: 128, 128>}, {transform_indices = @transform_1, window_bounds = array<i64: 128, 128>}, {transform_indices = @transform_2, window_bounds = array<i64: 128, 128>}, {transform_indices = @transform_3, window_bounds = array<i64: 1, 128>}, {transform_indices = @transform_4, window_bounds = array<i64: 1, 128>}]} {
    %c0_i32 = arith.constant 0 : i32
    %0 = arith.cmpi eq, %arg2, %c0_i32 : i32
    %1 = arith.extui %0 : i1 to i32
    %c0_i32_0 = arith.constant 0 : i32
    %2 = arith.cmpi ne, %1, %c0_i32_0 : i32
    scf.if %2 {
      %cst_13 = arith.constant 0.000000e+00 : f32
      %17 = vector.broadcast %cst_13 : f32 to vector<128x128xf32>
      %c0_14 = arith.constant 0 : index
      %c0_15 = arith.constant 0 : index
      %18 = vector.load %arg8[%c0_14, %c0_15] : memref<128x128xf32, #tpu.memory_space<vmem>>, vector<128x128xf32>
      tpu.vector_store %arg8[%c0_14, %c0_15], %17 {strides = array<i32>} : memref<128x128xf32, #tpu.memory_space<vmem>>, vector<128x128xf32>,
    } else {
    }
    %c0 = arith.constant 0 : index
    %c0_1 = arith.constant 0 : index
    %3 = vector.load %arg8[%c0, %c0_1] : memref<128x128xf32, #tpu.memory_space<vmem>>, vector<128x128xf32>
    %c0_2 = arith.constant 0 : index
    %c0_3 = arith.constant 0 : index
    %4 = vector.load %arg3[%c0_2, %c0_3] : memref<128x128xf32, #tpu.memory_space<vmem>>, vector<128x128xf32>
    %c0_4 = arith.constant 0 : index
    %c0_5 = arith.constant 0 : index
    %5 = vector.load %arg4[%c0_4, %c0_5] : memref<128x128xf32, #tpu.memory_space<vmem>>, vector<128x128xf32>
    %cst = arith.constant dense<0.000000e+00> : vector<128x128xf32>
    %6 = tpu.matmul %4, %5, %cst {dimension_numbers = #tpu.dot_dimension_numbers<[1], [0], [0], [1], [0, 0, 1, 1], [], []>} : vector<128x128xf32>, vector<128x128xf32>, vector<128x128xf32> -> vector<128x128xf32>
    %7 = arith.addf %3, %6 : vector<128x128xf32>
    %c0_6 = arith.constant 0 : index
    %c0_7 = arith.constant 0 : index
    %8 = vector.load %arg8[%c0_6, %c0_7] : memref<128x128xf32, #tpu.memory_space<vmem>>, vector<128x128xf32>
    tpu.vector_store %arg8[%c0_6, %c0_7], %7 {strides = array<i32>} : memref<128x128xf32, #tpu.memory_space<vmem>>, vector<128x128xf32>,
    %c0_i32_8 = arith.constant 0 : i32
    %9 = arith.cmpi eq, %arg2, %c0_i32_8 : i32
    %c0_i32_9 = arith.constant 0 : i32
    %10 = arith.cmpi eq, %arg1, %c0_i32_9 : i32
    %11 = arith.andi %9, %10 : i1
    %12 = arith.extui %11 : i1 to i32
    %c0_i32_10 = arith.constant 0 : i32
    %13 = arith.cmpi ne, %12, %c0_i32_10 : i32
    scf.if %13 {
      %cst_13 = arith.constant 0.000000e+00 : f32
      %17 = vector.broadcast %cst_13 : f32 to vector<1x128xf32>
      %c0_14 = arith.constant 0 : index
      %c0_15 = arith.constant 0 : index
      %18 = vector.load %arg6[%c0_14, %c0_15] : memref<1x128xf32, #tpu.memory_space<vmem>>, vector<1x128xf32>
      tpu.vector_store %arg6[%c0_14, %c0_15], %17 {strides = array<i32>} : memref<1x128xf32, #tpu.memory_space<vmem>>, vector<1x128xf32>,
      %cst_16 = arith.constant 0.000000e+00 : f32
      %19 = vector.broadcast %cst_16 : f32 to vector<1x128xf32>
      %c0_17 = arith.constant 0 : index
      %c0_18 = arith.constant 0 : index
      %20 = vector.load %arg7[%c0_17, %c0_18] : memref<1x128xf32, #tpu.memory_space<vmem>>, vector<1x128xf32>
      tpu.vector_store %arg7[%c0_17, %c0_18], %19 {strides = array<i32>} : memref<1x128xf32, #tpu.memory_space<vmem>>, vector<1x128xf32>,
    } else {
    }
    %c0_i32_11 = arith.constant 0 : i32
    %14 = arith.cmpi eq, %arg2, %c0_i32_11 : i32
    %15 = arith.extui %14 : i1 to i32
    %c0_i32_12 = arith.constant 0 : i32
    %16 = arith.cmpi ne, %15, %c0_i32_12 : i32
    scf.if %16 {
      %c0_13 = arith.constant 0 : index
      %c0_14 = arith.constant 0 : index
      %17 = vector.load %arg8[%c0_13, %c0_14] : memref<128x128xf32, #tpu.memory_space<vmem>>, vector<128x128xf32>
      %c0_15 = arith.constant 0 : index
      %c0_16 = arith.constant 0 : index
      %18 = vector.load %arg5[%c0_15, %c0_16] : memref<128x128xf32, #tpu.memory_space<vmem>>, vector<128x128xf32>
      tpu.vector_store %arg5[%c0_15, %c0_16], %17 {strides = array<i32>} : memref<128x128xf32, #tpu.memory_space<vmem>>, vector<128x128xf32>,
      %c0_17 = arith.constant 0 : index
      %c0_18 = arith.constant 0 : index
      %19 = vector.load %arg6[%c0_17, %c0_18] : memref<1x128xf32, #tpu.memory_space<vmem>>, vector<1x128xf32>
      %cst_19 = arith.constant dense<0.000000e+00> : vector<128xf32>
      %20 = vector.multi_reduction <add>, %17, %cst_19 [0] : vector<128x128xf32> to vector<128xf32>
      %21 = vector.shape_cast %20 : vector<128xf32> to vector<1x128xf32>
      %22 = arith.addf %19, %21 : vector<1x128xf32>
      %c0_20 = arith.constant 0 : index
      %c0_21 = arith.constant 0 : index
      %23 = vector.load %arg6[%c0_20, %c0_21] : memref<1x128xf32, #tpu.memory_space<vmem>>, vector<1x128xf32>
      tpu.vector_store %arg6[%c0_20, %c0_21], %22 {strides = array<i32>} : memref<1x128xf32, #tpu.memory_space<vmem>>, vector<1x128xf32>,
      %c0_22 = arith.constant 0 : index
      %c0_23 = arith.constant 0 : index
      %24 = vector.load %arg7[%c0_22, %c0_23] : memref<1x128xf32, #tpu.memory_space<vmem>>, vector<1x128xf32>
      %25 = arith.mulf %17, %17 : vector<128x128xf32>
      %cst_24 = arith.constant dense<0.000000e+00> : vector<128xf32>
      %26 = vector.multi_reduction <add>, %25, %cst_24 [0] : vector<128x128xf32> to vector<128xf32>
      %27 = vector.shape_cast %26 : vector<128xf32> to vector<1x128xf32>
      %28 = arith.addf %24, %27 : vector<1x128xf32>
      %c0_25 = arith.constant 0 : index
      %c0_26 = arith.constant 0 : index
      %29 = vector.load %arg7[%c0_25, %c0_26] : memref<1x128xf32, #tpu.memory_space<vmem>>, vector<1x128xf32>
      tpu.vector_store %arg7[%c0_25, %c0_26], %28 {strides = array<i32>} : memref<1x128xf32, #tpu.memory_space<vmem>>, vector<1x128xf32>,
    } else {
    }
    return
  }
  func.func @transform_0(%arg0: i32, %arg1: i32, %arg2: i32) -> (i32, i32) {
    %c0_i32 = arith.constant 0 : i32
    return %arg1, %arg2 : i32, i32
  }
  func.func @transform_1(%arg0: i32, %arg1: i32, %arg2: i32) -> (i32, i32) {
    %c0_i32 = arith.constant 0 : i32
    return %arg2, %arg0 : i32, i32
  }
  func.func @transform_2(%arg0: i32, %arg1: i32, %arg2: i32) -> (i32, i32) {
    %c0_i32 = arith.constant 0 : i32
    return %arg1, %arg0 : i32, i32
  }
  func.func @transform_3(%arg0: i32, %arg1: i32, %arg2: i32) -> (i32, i32) {
    %c0_i32 = arith.constant 0 : i32
    %c0_i32_0 = arith.constant 0 : i32
    return %c0_i32, %arg0 : i32, i32
  }
  func.func @transform_4(%arg0: i32, %arg1: i32, %arg2: i32) -> (i32, i32) {
    %c0_i32 = arith.constant 0 : i32
    %c0_i32_0 = arith.constant 0 : i32
    return %c0_i32, %arg0 : i32, i32
  }
}

module attributes {stable_mosaic.version = 11 : i64} {
  func.func @_affine_relu_kernel(%arg0: i32, %arg1: i32, %arg2: memref<128x128xf32, #tpu.memory_space<vmem>>, %arg3: memref<1x128xf32, #tpu.memory_space<vmem>>, %arg4: memref<1x128xf32, #tpu.memory_space<vmem>>, %arg5: memref<128x128xf32, #tpu.memory_space<vmem>>) attributes {dimension_semantics = [#tpu.dimension_semantics<parallel>, #tpu.dimension_semantics<parallel>], iteration_bounds = array<i64: 1, 1>, scalar_prefetch = 0 : i64, scratch_operands = 0 : i64, tpu.core_type = #tpu.core_type<tc>, window_params = [{transform_indices = @transform_0, window_bounds = array<i64: 128, 128>}, {transform_indices = @transform_1, window_bounds = array<i64: 1, 128>}, {transform_indices = @transform_2, window_bounds = array<i64: 1, 128>}, {transform_indices = @transform_3, window_bounds = array<i64: 128, 128>}]} {
    %c0 = arith.constant 0 : index
    %c0_0 = arith.constant 0 : index
    %0 = vector.load %arg2[%c0, %c0_0] : memref<128x128xf32, #tpu.memory_space<vmem>>, vector<128x128xf32>
    %c0_1 = arith.constant 0 : index
    %c0_2 = arith.constant 0 : index
    %1 = vector.load %arg3[%c0_1, %c0_2] : memref<1x128xf32, #tpu.memory_space<vmem>>, vector<1x128xf32>
    %2 = vector.broadcast %1 : vector<1x128xf32> to vector<128x128xf32>
    %3 = arith.mulf %0, %2 : vector<128x128xf32>
    %c0_3 = arith.constant 0 : index
    %c0_4 = arith.constant 0 : index
    %4 = vector.load %arg4[%c0_3, %c0_4] : memref<1x128xf32, #tpu.memory_space<vmem>>, vector<1x128xf32>
    %5 = vector.broadcast %4 : vector<1x128xf32> to vector<128x128xf32>
    %6 = arith.addf %3, %5 : vector<128x128xf32>
    %cst = arith.constant 0.000000e+00 : f32
    %7 = vector.broadcast %cst : f32 to vector<128x128xf32>
    %8 = arith.maximumf %6, %7 : vector<128x128xf32>
    %c0_5 = arith.constant 0 : index
    %c0_6 = arith.constant 0 : index
    %9 = vector.load %arg5[%c0_5, %c0_6] : memref<128x128xf32, #tpu.memory_space<vmem>>, vector<128x128xf32>
    tpu.vector_store %arg5[%c0_5, %c0_6], %8 {strides = array<i32>} : memref<128x128xf32, #tpu.memory_space<vmem>>, vector<128x128xf32>,
    return
  }
  func.func @transform_0(%arg0: i32, %arg1: i32) -> (i32, i32) {
    %c0_i32 = arith.constant 0 : i32
    return %arg1, %arg0 : i32, i32
  }
  func.func @transform_1(%arg0: i32, %arg1: i32) -> (i32, i32) {
    %c0_i32 = arith.constant 0 : i32
    %c0_i32_0 = arith.constant 0 : i32
    return %c0_i32, %arg0 : i32, i32
  }
  func.func @transform_2(%arg0: i32, %arg1: i32) -> (i32, i32) {
    %c0_i32 = arith.constant 0 : i32
    %c0_i32_0 = arith.constant 0 : i32
    return %c0_i32, %arg0 : i32, i32
  }
  func.func @transform_3(%arg0: i32, %arg1: i32) -> (i32, i32) {
    %c0_i32 = arith.constant 0 : i32
    return %arg1, %arg0 : i32, i32
  }
}

module attributes {stable_mosaic.version = 11 : i64} {
  func.func @_affine2_relu_kernel(%arg0: i32, %arg1: i32, %arg2: memref<128x128xf32, #tpu.memory_space<vmem>>, %arg3: memref<1x128xf32, #tpu.memory_space<vmem>>, %arg4: memref<1x128xf32, #tpu.memory_space<vmem>>, %arg5: memref<128x128xf32, #tpu.memory_space<vmem>>, %arg6: memref<1x128xf32, #tpu.memory_space<vmem>>, %arg7: memref<1x128xf32, #tpu.memory_space<vmem>>, %arg8: memref<128x128xf32, #tpu.memory_space<vmem>>) attributes {dimension_semantics = [#tpu.dimension_semantics<parallel>, #tpu.dimension_semantics<parallel>], iteration_bounds = array<i64: 1, 1>, scalar_prefetch = 0 : i64, scratch_operands = 0 : i64, tpu.core_type = #tpu.core_type<tc>, window_params = [{transform_indices = @transform_0, window_bounds = array<i64: 128, 128>}, {transform_indices = @transform_1, window_bounds = array<i64: 1, 128>}, {transform_indices = @transform_2, window_bounds = array<i64: 1, 128>}, {transform_indices = @transform_3, window_bounds = array<i64: 128, 128>}, {transform_indices = @transform_4, window_bounds = array<i64: 1, 128>}, {transform_indices = @transform_5, window_bounds = array<i64: 1, 128>}, {transform_indices = @transform_6, window_bounds = array<i64: 128, 128>}]} {
    %c0 = arith.constant 0 : index
    %c0_0 = arith.constant 0 : index
    %0 = vector.load %arg2[%c0, %c0_0] : memref<128x128xf32, #tpu.memory_space<vmem>>, vector<128x128xf32>
    %c0_1 = arith.constant 0 : index
    %c0_2 = arith.constant 0 : index
    %1 = vector.load %arg3[%c0_1, %c0_2] : memref<1x128xf32, #tpu.memory_space<vmem>>, vector<1x128xf32>
    %2 = vector.broadcast %1 : vector<1x128xf32> to vector<128x128xf32>
    %3 = arith.mulf %0, %2 : vector<128x128xf32>
    %c0_3 = arith.constant 0 : index
    %c0_4 = arith.constant 0 : index
    %4 = vector.load %arg4[%c0_3, %c0_4] : memref<1x128xf32, #tpu.memory_space<vmem>>, vector<1x128xf32>
    %5 = vector.broadcast %4 : vector<1x128xf32> to vector<128x128xf32>
    %6 = arith.addf %3, %5 : vector<128x128xf32>
    %c0_5 = arith.constant 0 : index
    %c0_6 = arith.constant 0 : index
    %7 = vector.load %arg5[%c0_5, %c0_6] : memref<128x128xf32, #tpu.memory_space<vmem>>, vector<128x128xf32>
    %c0_7 = arith.constant 0 : index
    %c0_8 = arith.constant 0 : index
    %8 = vector.load %arg6[%c0_7, %c0_8] : memref<1x128xf32, #tpu.memory_space<vmem>>, vector<1x128xf32>
    %9 = vector.broadcast %8 : vector<1x128xf32> to vector<128x128xf32>
    %10 = arith.mulf %7, %9 : vector<128x128xf32>
    %11 = arith.addf %6, %10 : vector<128x128xf32>
    %c0_9 = arith.constant 0 : index
    %c0_10 = arith.constant 0 : index
    %12 = vector.load %arg7[%c0_9, %c0_10] : memref<1x128xf32, #tpu.memory_space<vmem>>, vector<1x128xf32>
    %13 = vector.broadcast %12 : vector<1x128xf32> to vector<128x128xf32>
    %14 = arith.addf %11, %13 : vector<128x128xf32>
    %cst = arith.constant 0.000000e+00 : f32
    %15 = vector.broadcast %cst : f32 to vector<128x128xf32>
    %16 = arith.maximumf %14, %15 : vector<128x128xf32>
    %c0_11 = arith.constant 0 : index
    %c0_12 = arith.constant 0 : index
    %17 = vector.load %arg8[%c0_11, %c0_12] : memref<128x128xf32, #tpu.memory_space<vmem>>, vector<128x128xf32>
    tpu.vector_store %arg8[%c0_11, %c0_12], %16 {strides = array<i32>} : memref<128x128xf32, #tpu.memory_space<vmem>>, vector<128x128xf32>,
    return
  }
  func.func @transform_0(%arg0: i32, %arg1: i32) -> (i32, i32) {
    %c0_i32 = arith.constant 0 : i32
    return %arg1, %arg0 : i32, i32
  }
  func.func @transform_1(%arg0: i32, %arg1: i32) -> (i32, i32) {
    %c0_i32 = arith.constant 0 : i32
    %c0_i32_0 = arith.constant 0 : i32
    return %c0_i32, %arg0 : i32, i32
  }
  func.func @transform_2(%arg0: i32, %arg1: i32) -> (i32, i32) {
    %c0_i32 = arith.constant 0 : i32
    %c0_i32_0 = arith.constant 0 : i32
    return %c0_i32, %arg0 : i32, i32
  }
  func.func @transform_3(%arg0: i32, %arg1: i32) -> (i32, i32) {
    %c0_i32 = arith.constant 0 : i32
    return %arg1, %arg0 : i32, i32
  }
  func.func @transform_4(%arg0: i32, %arg1: i32) -> (i32, i32) {
    %c0_i32 = arith.constant 0 : i32
    %c0_i32_0 = arith.constant 0 : i32
    return %c0_i32, %arg0 : i32, i32
  }
  func.func @transform_5(%arg0: i32, %arg1: i32) -> (i32, i32) {
    %c0_i32 = arith.constant 0 : i32
    %c0_i32_0 = arith.constant 0 : i32
    return %c0_i32, %arg0 : i32, i32
  }
  func.func @transform_6(%arg0: i32, %arg1: i32) -> (i32, i32) {
    %c0_i32 = arith.constant 0 : i32
    return %arg1, %arg0 : i32, i32
  }
}

</mosaic_0001>

<llo_original>
// kernel: bottleneck_forward.8
$region0: #{bottleneck_forward.8}
  #allocation0 [shape = 'u32[]', space=smem, size = 0x4, offset = 0x4, fixed_abs, tag = 'smem constant byte address 0x4 - core index']
  #allocation1 [shape = 'u32[72,128]{1,0:T(1,128)}', space=vmem, size = 0x9000, scoped, tag = 'internal scratch']
  %s0 = inlined_call_operand.vmem [shape: f32[512,128], index: 0, kind: input, shape index: {}]
  %s1 = inlined_call_operand.vmem [shape: f32[1,128], index: 1, kind: input, shape index: {}]
  %s2 = inlined_call_operand.vmem [shape: f32[1,128], index: 2, kind: input, shape index: {}]
  %s3 = inlined_call_operand.vmem [shape: f32[512,128], index: 3, kind: output, shape index: {}]
  %s4 = sld [smem:[#allocation0]]
  $region22: #{bottleneck_forward.8} parent=0
    _
  %s6 = ssub.s32 1, %s4
  %s7 = scalar_select 0, %s6, %s4
  // Predicated region
  $region2: #{bottleneck_forward.8} parent=0 // pred_check
    _
  $region3: #{bottleneck_forward.8} parent=0 // pred_check_branch
    %9 = sbr.rel (0) target = $region5
  $region4: #{bottleneck_forward.8} parent=0 // pred_region
    _
  $region5: #{bottleneck_forward.8} parent=0 // pred_fallthru
    _
  // Predicated region
  $region6: #{bottleneck_forward.8} parent=0 // pred_check
    _
  $region7: #{bottleneck_forward.8} parent=0 // pred_check_branch
    %11 = sbr.rel (0) target = $region9
  $region8: #{bottleneck_forward.8} parent=0 // pred_region
    _
  $region9: #{bottleneck_forward.8} parent=0 // pred_fallthru
    _
  // Predicated region
  $region10: #{bottleneck_forward.8} parent=0 // pred_check
    _
  $region11: #{bottleneck_forward.8} parent=0 // pred_check_branch
    %13 = sbr.rel (0) target = $region13
  $region12: #{bottleneck_forward.8} parent=0 // pred_region
    _
  $region13: #{bottleneck_forward.8} parent=0 // pred_fallthru
    _
  %v14 = vld [vmem:[%s0] sm:$0xff]
  %v15 = vld [vmem:[%s0 + $0x8] sm:$0xff]
  %v16 = vld [vmem:[%s0 + $0x10] sm:$0xff]
  %v17 = vld [vmem:[%s0 + $0x18] sm:$0xff]
  %v18 = vld [vmem:[%s0 + $0x20] sm:$0xff]
  %v19 = vld [vmem:[%s0 + $0x28] sm:$0xff]
  %v20 = vld [vmem:[%s0 + $0x30] sm:$0xff]
  %v21 = vld [vmem:[%s0 + $0x38] sm:$0xff]
  %v22 = vld [vmem:[%s0 + $0x40] sm:$0xff]
  %v23 = vld [vmem:[%s0 + $0x48] sm:$0xff]
  %v24 = vld [vmem:[%s0 + $0x50] sm:$0xff]
  %v25 = vld [vmem:[%s0 + $0x58] sm:$0xff]
  %v26 = vld [vmem:[%s0 + $0x60] sm:$0xff]
  %v27 = vld [vmem:[%s0 + $0x68] sm:$0xff]
  %v28 = vld [vmem:[%s0 + $0x70] sm:$0xff]
  %v29 = vld [vmem:[%s0 + $0x78] sm:$0xff]
  %v30 = vld [vmem:[%s0 + $0x80] sm:$0xff]
  %v31 = vld [vmem:[%s0 + $0x88] sm:$0xff]
  %v32 = vld [vmem:[%s0 + $0x90] sm:$0xff]
  %v33 = vld [vmem:[%s0 + $0x98] sm:$0xff]
  %v34 = vld [vmem:[%s0 + $0xa0] sm:$0xff]
  %v35 = vld [vmem:[%s0 + $0xa8] sm:$0xff]
  %v36 = vld [vmem:[%s0 + $0xb0] sm:$0xff]
  %v37 = vld [vmem:[%s0 + $0xb8] sm:$0xff]
  %v38 = vld [vmem:[%s0 + $0xc0] sm:$0xff]
  %v39 = vld [vmem:[%s0 + $0xc8] sm:$0xff]
  %v40 = vld [vmem:[%s0 + $0xd0] sm:$0xff]
  %v41 = vld [vmem:[%s0 + $0xd8] sm:$0xff]
  %v42 = vld [vmem:[%s0 + $0xe0] sm:$0xff]
  %v43 = vld [vmem:[%s0 + $0xe8] sm:$0xff]
  %v44 = vld [vmem:[%s0 + $0xf0] sm:$0xff]
  %v45 = vld [vmem:[%s0 + $0xf8] sm:$0xff]
  %v46 = vld [vmem:[%s0 + $0x100] sm:$0xff]
  %v47 = vld [vmem:[%s0 + $0x108] sm:$0xff]
  %v48 = vld [vmem:[%s0 + $0x110] sm:$0xff]
  %v49 = vld [vmem:[%s0 + $0x118] sm:$0xff]
  %v50 = vld [vmem:[%s0 + $0x120] sm:$0xff]
  %v51 = vld [vmem:[%s0 + $0x128] sm:$0xff]
  %v52 = vld [vmem:[%s0 + $0x130] sm:$0xff]
  %v53 = vld [vmem:[%s0 + $0x138] sm:$0xff]
  %v54 = vld [vmem:[%s0 + $0x140] sm:$0xff]
  %v55 = vld [vmem:[%s0 + $0x148] sm:$0xff]
  %v56 = vld [vmem:[%s0 + $0x150] sm:$0xff]
  %v57 = vld [vmem:[%s0 + $0x158] sm:$0xff]
  %v58 = vld [vmem:[%s0 + $0x160] sm:$0xff]
  %v59 = vld [vmem:[%s0 + $0x168] sm:$0xff]
  %v60 = vld [vmem:[%s0 + $0x170] sm:$0xff]
  %v61 = vld [vmem:[%s0 + $0x178] sm:$0xff]
  %v62 = vld [vmem:[%s0 + $0x180] sm:$0xff]
  %v63 = vld [vmem:[%s0 + $0x188] sm:$0xff]
  %v64 = vld [vmem:[%s0 + $0x190] sm:$0xff]
  %v65 = vld [vmem:[%s0 + $0x198] sm:$0xff]
  %v66 = vld [vmem:[%s0 + $0x1a0] sm:$0xff]
  %v67 = vld [vmem:[%s0 + $0x1a8] sm:$0xff]
  %v68 = vld [vmem:[%s0 + $0x1b0] sm:$0xff]
  %v69 = vld [vmem:[%s0 + $0x1b8] sm:$0xff]
  %v70 = vld [vmem:[%s0 + $0x1c0] sm:$0xff]
  %v71 = vld [vmem:[%s0 + $0x1c8] sm:$0xff]
  %v72 = vld [vmem:[%s0 + $0x1d0] sm:$0xff]
  %v73 = vld [vmem:[%s0 + $0x1d8] sm:$0xff]
  %v74 = vld [vmem:[%s0 + $0x1e0] sm:$0xff]
  %v75 = vld [vmem:[%s0 + $0x1e8] sm:$0xff]
  %v76 = vld [vmem:[%s0 + $0x1f0] sm:$0xff]
  %v77 = vld [vmem:[%s0 + $0x1f8] sm:$0xff]
  %v78 = vld [vmem:[%s1] sm:$0x1]
  %v80 = vperm.slane %v78, 0
  %v82 = vmul.f32 %v14, %v80
  %v83 = vmul.f32 %v15, %v80
  %v84 = vmul.f32 %v16, %v80
  %v85 = vmul.f32 %v17, %v80
  %v86 = vmul.f32 %v18, %v80
  %v87 = vmul.f32 %v19, %v80
  %v88 = vmul.f32 %v20, %v80
  %v89 = vmul.f32 %v21, %v80
  %v90 = vmul.f32 %v22, %v80
  %v91 = vmul.f32 %v23, %v80
  %v92 = vmul.f32 %v24, %v80
  %v93 = vmul.f32 %v25, %v80
  %v94 = vmul.f32 %v26, %v80
  %v95 = vmul.f32 %v27, %v80
  %v96 = vmul.f32 %v28, %v80
  %v97 = vmul.f32 %v29, %v80
  %v98 = vmul.f32 %v30, %v80
  %v99 = vmul.f32 %v31, %v80
  %v100 = vmul.f32 %v32, %v80
  %v101 = vmul.f32 %v33, %v80
  %v102 = vmul.f32 %v34, %v80
  %v103 = vmul.f32 %v35, %v80
  %v104 = vmul.f32 %v36, %v80
  %v105 = vmul.f32 %v37, %v80
  %v106 = vmul.f32 %v38, %v80
  %v107 = vmul.f32 %v39, %v80
  %v108 = vmul.f32 %v40, %v80
  %v109 = vmul.f32 %v41, %v80
  %v110 = vmul.f32 %v42, %v80
  %v111 = vmul.f32 %v43, %v80
  %v112 = vmul.f32 %v44, %v80
  %v113 = vmul.f32 %v45, %v80
  %v114 = vmul.f32 %v46, %v80
  %v115 = vmul.f32 %v47, %v80
  %v116 = vmul.f32 %v48, %v80
  %v117 = vmul.f32 %v49, %v80
  %v118 = vmul.f32 %v50, %v80
  %v119 = vmul.f32 %v51, %v80
  %v120 = vmul.f32 %v52, %v80
  %v121 = vmul.f32 %v53, %v80
  %v122 = vmul.f32 %v54, %v80
  %v123 = vmul.f32 %v55, %v80
  %v124 = vmul.f32 %v56, %v80
  %v125 = vmul.f32 %v57, %v80
  %v126 = vmul.f32 %v58, %v80
  %v127 = vmul.f32 %v59, %v80
  %v128 = vmul.f32 %v60, %v80
  %v129 = vmul.f32 %v61, %v80
  %v130 = vmul.f32 %v62, %v80
  %v131 = vmul.f32 %v63, %v80
  %v132 = vmul.f32 %v64, %v80
  %v133 = vmul.f32 %v65, %v80
  %v134 = vmul.f32 %v66, %v80
  %v135 = vmul.f32 %v67, %v80
  %v136 = vmul.f32 %v68, %v80
  %v137 = vmul.f32 %v69, %v80
  %v138 = vmul.f32 %v70, %v80
  %v139 = vmul.f32 %v71, %v80
  %v140 = vmul.f32 %v72, %v80
  %v141 = vmul.f32 %v73, %v80
  %v142 = vmul.f32 %v74, %v80
  %v143 = vmul.f32 %v75, %v80
  %v144 = vmul.f32 %v76, %v80
  %v145 = vmul.f32 %v77, %v80
  %v146 = vld [vmem:[%s2] sm:$0x1]
  %v148 = vperm.slane %v146, 0
  %v150 = vadd.f32 %v82, %v148
  %v151 = vadd.f32 %v83, %v148
  %v152 = vadd.f32 %v84, %v148
  %v153 = vadd.f32 %v85, %v148
  %v154 = vadd.f32 %v86, %v148
  %v155 = vadd.f32 %v87, %v148
  %v156 = vadd.f32 %v88, %v148
  %v157 = vadd.f32 %v89, %v148
  %v158 = vadd.f32 %v90, %v148
  %v159 = vadd.f32 %v91, %v148
  %v160 = vadd.f32 %v92, %v148
  %v161 = vadd.f32 %v93, %v148
  %v162 = vadd.f32 %v94, %v148
  %v163 = vadd.f32 %v95, %v148
  %v164 = vadd.f32 %v96, %v148
  %v165 = vadd.f32 %v97, %v148
  %v166 = vadd.f32 %v98, %v148
  %v167 = vadd.f32 %v99, %v148
  %v168 = vadd.f32 %v100, %v148
  %v169 = vadd.f32 %v101, %v148
  %v170 = vadd.f32 %v102, %v148
  %v171 = vadd.f32 %v103, %v148
  %v172 = vadd.f32 %v104, %v148
  %v173 = vadd.f32 %v105, %v148
  %v174 = vadd.f32 %v106, %v148
  %v175 = vadd.f32 %v107, %v148
  %v176 = vadd.f32 %v108, %v148
  %v177 = vadd.f32 %v109, %v148
  %v178 = vadd.f32 %v110, %v148
  %v179 = vadd.f32 %v111, %v148
  %v180 = vadd.f32 %v112, %v148
  %v181 = vadd.f32 %v113, %v148
  %v182 = vadd.f32 %v114, %v148
  %v183 = vadd.f32 %v115, %v148
  %v184 = vadd.f32 %v116, %v148
  %v185 = vadd.f32 %v117, %v148
  %v186 = vadd.f32 %v118, %v148
  %v187 = vadd.f32 %v119, %v148
  %v188 = vadd.f32 %v120, %v148
  %v189 = vadd.f32 %v121, %v148
  %v190 = vadd.f32 %v122, %v148
  %v191 = vadd.f32 %v123, %v148
  %v192 = vadd.f32 %v124, %v148
  %v193 = vadd.f32 %v125, %v148
  %v194 = vadd.f32 %v126, %v148
  %v195 = vadd.f32 %v127, %v148
  %v196 = vadd.f32 %v128, %v148
  %v197 = vadd.f32 %v129, %v148
  %v198 = vadd.f32 %v130, %v148
  %v199 = vadd.f32 %v131, %v148
  %v200 = vadd.f32 %v132, %v148
  %v201 = vadd.f32 %v133, %v148
  %v202 = vadd.f32 %v134, %v148
  %v203 = vadd.f32 %v135, %v148
  %v204 = vadd.f32 %v136, %v148
  %v205 = vadd.f32 %v137, %v148
  %v206 = vadd.f32 %v138, %v148
  %v207 = vadd.f32 %v139, %v148
  %v208 = vadd.f32 %v140, %v148
  %v209 = vadd.f32 %v141, %v148
  %v210 = vadd.f32 %v142, %v148
  %v211 = vadd.f32 %v143, %v148
  %v212 = vadd.f32 %v144, %v148
  %v213 = vadd.f32 %v145, %v148
  %v214 = vmax.f32 %v150, 0.0
  %v215 = vmax.f32 %v151, 0.0
  %v216 = vmax.f32 %v152, 0.0
  %v217 = vmax.f32 %v153, 0.0
  %v218 = vmax.f32 %v154, 0.0
  %v219 = vmax.f32 %v155, 0.0
  %v220 = vmax.f32 %v156, 0.0
  %v221 = vmax.f32 %v157, 0.0
  %v222 = vmax.f32 %v158, 0.0
  %v223 = vmax.f32 %v159, 0.0
  %v224 = vmax.f32 %v160, 0.0
  %v225 = vmax.f32 %v161, 0.0
  %v226 = vmax.f32 %v162, 0.0
  %v227 = vmax.f32 %v163, 0.0
  %v228 = vmax.f32 %v164, 0.0
  %v229 = vmax.f32 %v165, 0.0
  %v230 = vmax.f32 %v166, 0.0
  %v231 = vmax.f32 %v167, 0.0
  %v232 = vmax.f32 %v168, 0.0
  %v233 = vmax.f32 %v169, 0.0
  %v234 = vmax.f32 %v170, 0.0
  %v235 = vmax.f32 %v171, 0.0
  %v236 = vmax.f32 %v172, 0.0
  %v237 = vmax.f32 %v173, 0.0
  %v238 = vmax.f32 %v174, 0.0
  %v239 = vmax.f32 %v175, 0.0
  %v240 = vmax.f32 %v176, 0.0
  %v241 = vmax.f32 %v177, 0.0
  %v242 = vmax.f32 %v178, 0.0
  %v243 = vmax.f32 %v179, 0.0
  %v244 = vmax.f32 %v180, 0.0
  %v245 = vmax.f32 %v181, 0.0
  %v246 = vmax.f32 %v182, 0.0
  %v247 = vmax.f32 %v183, 0.0
  %v248 = vmax.f32 %v184, 0.0
  %v249 = vmax.f32 %v185, 0.0
  %v250 = vmax.f32 %v186, 0.0
  %v251 = vmax.f32 %v187, 0.0
  %v252 = vmax.f32 %v188, 0.0
  %v253 = vmax.f32 %v189, 0.0
  %v254 = vmax.f32 %v190, 0.0
  %v255 = vmax.f32 %v191, 0.0
  %v256 = vmax.f32 %v192, 0.0
  %v257 = vmax.f32 %v193, 0.0
  %v258 = vmax.f32 %v194, 0.0
  %v259 = vmax.f32 %v195, 0.0
  %v260 = vmax.f32 %v196, 0.0
  %v261 = vmax.f32 %v197, 0.0
  %v262 = vmax.f32 %v198, 0.0
  %v263 = vmax.f32 %v199, 0.0
  %v264 = vmax.f32 %v200, 0.0
  %v265 = vmax.f32 %v201, 0.0
  %v266 = vmax.f32 %v202, 0.0
  %v267 = vmax.f32 %v203, 0.0
  %v268 = vmax.f32 %v204, 0.0
  %v269 = vmax.f32 %v205, 0.0
  %v270 = vmax.f32 %v206, 0.0
  %v271 = vmax.f32 %v207, 0.0
  %v272 = vmax.f32 %v208, 0.0
  %v273 = vmax.f32 %v209, 0.0
  %v274 = vmax.f32 %v210, 0.0
  %v275 = vmax.f32 %v211, 0.0
  %v276 = vmax.f32 %v212, 0.0
  %v277 = vmax.f32 %v213, 0.0
  %278 = vst [vmem:[%s3] sm:$0xff] %v214
  %279 = vst [vmem:[%s3 + $0x8] sm:$0xff] %v215
  %280 = vst [vmem:[%s3 + $0x10] sm:$0xff] %v216
  %281 = vst [vmem:[%s3 + $0x18] sm:$0xff] %v217
  %282 = vst [vmem:[%s3 + $0x20] sm:$0xff] %v218
  %283 = vst [vmem:[%s3 + $0x28] sm:$0xff] %v219
  %284 = vst [vmem:[%s3 + $0x30] sm:$0xff] %v220
  %285 = vst [vmem:[%s3 + $0x38] sm:$0xff] %v221
  %286 = vst [vmem:[%s3 + $0x40] sm:$0xff] %v222
  %287 = vst [vmem:[%s3 + $0x48] sm:$0xff] %v223
  %288 = vst [vmem:[%s3 + $0x50] sm:$0xff] %v224
  %289 = vst [vmem:[%s3 + $0x58] sm:$0xff] %v225
  %290 = vst [vmem:[%s3 + $0x60] sm:$0xff] %v226
  %291 = vst [vmem:[%s3 + $0x68] sm:$0xff] %v227
  %292 = vst [vmem:[%s3 + $0x70] sm:$0xff] %v228
  %293 = vst [vmem:[%s3 + $0x78] sm:$0xff] %v229
  %294 = vst [vmem:[%s3 + $0x80] sm:$0xff] %v230
  %295 = vst [vmem:[%s3 + $0x88] sm:$0xff] %v231
  %296 = vst [vmem:[%s3 + $0x90] sm:$0xff] %v232
  %297 = vst [vmem:[%s3 + $0x98] sm:$0xff] %v233
  %298 = vst [vmem:[%s3 + $0xa0] sm:$0xff] %v234
  %299 = vst [vmem:[%s3 + $0xa8] sm:$0xff] %v235
  %300 = vst [vmem:[%s3 + $0xb0] sm:$0xff] %v236
  %301 = vst [vmem:[%s3 + $0xb8] sm:$0xff] %v237
  %302 = vst [vmem:[%s3 + $0xc0] sm:$0xff] %v238
  %303 = vst [vmem:[%s3 + $0xc8] sm:$0xff] %v239
  %304 = vst [vmem:[%s3 + $0xd0] sm:$0xff] %v240
  %305 = vst [vmem:[%s3 + $0xd8] sm:$0xff] %v241
  %306 = vst [vmem:[%s3 + $0xe0] sm:$0xff] %v242
  %307 = vst [vmem:[%s3 + $0xe8] sm:$0xff] %v243
  %308 = vst [vmem:[%s3 + $0xf0] sm:$0xff] %v244
  %309 = vst [vmem:[%s3 + $0xf8] sm:$0xff] %v245
  %310 = vst [vmem:[%s3 + $0x100] sm:$0xff] %v246
  %311 = vst [vmem:[%s3 + $0x108] sm:$0xff] %v247
  %312 = vst [vmem:[%s3 + $0x110] sm:$0xff] %v248
  %313 = vst [vmem:[%s3 + $0x118] sm:$0xff] %v249
  %314 = vst [vmem:[%s3 + $0x120] sm:$0xff] %v250
  %315 = vst [vmem:[%s3 + $0x128] sm:$0xff] %v251
  %316 = vst [vmem:[%s3 + $0x130] sm:$0xff] %v252
  %317 = vst [vmem:[%s3 + $0x138] sm:$0xff] %v253
  %318 = vst [vmem:[%s3 + $0x140] sm:$0xff] %v254
  %319 = vst [vmem:[%s3 + $0x148] sm:$0xff] %v255
  %320 = vst [vmem:[%s3 + $0x150] sm:$0xff] %v256
  %321 = vst [vmem:[%s3 + $0x158] sm:$0xff] %v257
  %322 = vst [vmem:[%s3 + $0x160] sm:$0xff] %v258
  %323 = vst [vmem:[%s3 + $0x168] sm:$0xff] %v259
  %324 = vst [vmem:[%s3 + $0x170] sm:$0xff] %v260
  %325 = vst [vmem:[%s3 + $0x178] sm:$0xff] %v261
  %326 = vst [vmem:[%s3 + $0x180] sm:$0xff] %v262
  %327 = vst [vmem:[%s3 + $0x188] sm:$0xff] %v263
  %328 = vst [vmem:[%s3 + $0x190] sm:$0xff] %v264
  %329 = vst [vmem:[%s3 + $0x198] sm:$0xff] %v265
  %330 = vst [vmem:[%s3 + $0x1a0] sm:$0xff] %v266
  %331 = vst [vmem:[%s3 + $0x1a8] sm:$0xff] %v267
  %332 = vst [vmem:[%s3 + $0x1b0] sm:$0xff] %v268
  %333 = vst [vmem:[%s3 + $0x1b8] sm:$0xff] %v269
  %334 = vst [vmem:[%s3 + $0x1c0] sm:$0xff] %v270
  %335 = vst [vmem:[%s3 + $0x1c8] sm:$0xff] %v271
  %336 = vst [vmem:[%s3 + $0x1d0] sm:$0xff] %v272
  %337 = vst [vmem:[%s3 + $0x1d8] sm:$0xff] %v273
  %338 = vst [vmem:[%s3 + $0x1e0] sm:$0xff] %v274
  %339 = vst [vmem:[%s3 + $0x1e8] sm:$0xff] %v275
  %340 = vst [vmem:[%s3 + $0x1f0] sm:$0xff] %v276
  %341 = vst [vmem:[%s3 + $0x1f8] sm:$0xff] %v277
  // Predicated region
  $region14: #{bottleneck_forward.8} parent=0 // pred_check
    _
  $region15: #{bottleneck_forward.8} parent=0 // pred_check_branch
    %343 = sbr.rel (0) target = $region17
  $region16: #{bottleneck_forward.8} parent=0 // pred_region
    _
  $region17: #{bottleneck_forward.8} parent=0 // pred_fallthru
    _
  // Predicated region
  $region18: #{bottleneck_forward.8} parent=0 // pred_check
    _
  $region19: #{bottleneck_forward.8} parent=0 // pred_check_branch
    %345 = sbr.rel (0) target = $region21
  $region20: #{bottleneck_forward.8} parent=0 // pred_region
    _
  $region21: #{bottleneck_forward.8} parent=0 // pred_fallthru
    _

// kernel: bottleneck_forward.7
$region0: #{bottleneck_forward.7}
  #allocation0 [shape = 'u32[]', space=smem, size = 0x4, offset = 0x4, fixed_abs, tag = 'smem constant byte address 0x4 - core index']
  #allocation1 [shape = 'u32[72,128]{1,0:T(1,128)}', space=vmem, size = 0x9000, scoped, tag = 'internal scratch']
  #allocation2 [shape = 'f32[512,128]{1,0:T(8,128)}', space=vmem, size = 0x40000, scoped, tag = 'scratch operand']
  %s0 = inlined_call_operand.vmem [shape: f32[512,128], index: 0, kind: input, shape index: {}]
  %s1 = inlined_call_operand.vmem [shape: f32[128,128], index: 1, kind: input, shape index: {}]
  %s2 = inlined_call_operand.vmem [shape: f32[512,128], index: 2, kind: output, shape index: {0}]
  %s3 = inlined_call_operand.vmem [shape: f32[1,128], index: 3, kind: output, shape index: {1}]
  %s4 = inlined_call_operand.vmem [shape: f32[1,128], index: 4, kind: output, shape index: {2}]
  %5 = xla_tuple %s2, %s3, %s4
  %s6 = sld [smem:[#allocation0]]
  $region46: #{bottleneck_forward.7} parent=0
    _
  %s8 = ssub.s32 1, %s6
  %s9 = scalar_select 0, %s8, %s6
  // Predicated region
  $region2: #{bottleneck_forward.7} parent=0 // pred_check
    _
  $region3: #{bottleneck_forward.7} parent=0 // pred_check_branch
    %11 = sbr.rel (0) target = $region5
  $region4: #{bottleneck_forward.7} parent=0 // pred_region
    _
  $region5: #{bottleneck_forward.7} parent=0 // pred_fallthru
    _
  // Predicated region
  $region6: #{bottleneck_forward.7} parent=0 // pred_check
    _
  $region7: #{bottleneck_forward.7} parent=0 // pred_check_branch
    %13 = sbr.rel (0) target = $region9
  $region8: #{bottleneck_forward.7} parent=0 // pred_region
    _
  $region9: #{bottleneck_forward.7} parent=0 // pred_fallthru
    _
  %p14 = scmp.eq.s32.totalorder 0, 0
  // Predicated region
  $region10: #{bottleneck_forward.7} parent=0 // pred_check
    %p15 = pneg %p14
  $region11: #{bottleneck_forward.7} parent=0 // pred_check_branch
    %17 = sbr.rel (%p15) target = $region13
  $region12: #{bottleneck_forward.7} parent=0 // pred_region
    %18 = vst [vmem:[#allocation2] sm:$0xff] 0.0
    %19 = vst [vmem:[#allocation2 + $0x8] sm:$0xff] 0.0
    %20 = vst [vmem:[#allocation2 + $0x10] sm:$0xff] 0.0
    %21 = vst [vmem:[#allocation2 + $0x18] sm:$0xff] 0.0
    %22 = vst [vmem:[#allocation2 + $0x20] sm:$0xff] 0.0
    %23 = vst [vmem:[#allocation2 + $0x28] sm:$0xff] 0.0
    %24 = vst [vmem:[#allocation2 + $0x30] sm:$0xff] 0.0
    %25 = vst [vmem:[#allocation2 + $0x38] sm:$0xff] 0.0
    %26 = vst [vmem:[#allocation2 + $0x40] sm:$0xff] 0.0
    %27 = vst [vmem:[#allocation2 + $0x48] sm:$0xff] 0.0
    %28 = vst [vmem:[#allocation2 + $0x50] sm:$0xff] 0.0
    %29 = vst [vmem:[#allocation2 + $0x58] sm:$0xff] 0.0
    %30 = vst [vmem:[#allocation2 + $0x60] sm:$0xff] 0.0
    %31 = vst [vmem:[#allocation2 + $0x68] sm:$0xff] 0.0
    %32 = vst [vmem:[#allocation2 + $0x70] sm:$0xff] 0.0
    %33 = vst [vmem:[#allocation2 + $0x78] sm:$0xff] 0.0
    %34 = vst [vmem:[#allocation2 + $0x80] sm:$0xff] 0.0
    %35 = vst [vmem:[#allocation2 + $0x88] sm:$0xff] 0.0
    %36 = vst [vmem:[#allocation2 + $0x90] sm:$0xff] 0.0
    %37 = vst [vmem:[#allocation2 + $0x98] sm:$0xff] 0.0
    %38 = vst [vmem:[#allocation2 + $0xa0] sm:$0xff] 0.0
    %39 = vst [vmem:[#allocation2 + $0xa8] sm:$0xff] 0.0
    %40 = vst [vmem:[#allocation2 + $0xb0] sm:$0xff] 0.0
    %41 = vst [vmem:[#allocation2 + $0xb8] sm:$0xff] 0.0
    %42 = vst [vmem:[#allocation2 + $0xc0] sm:$0xff] 0.0
    %43 = vst [vmem:[#allocation2 + $0xc8] sm:$0xff] 0.0
    %44 = vst [vmem:[#allocation2 + $0xd0] sm:$0xff] 0.0
    %45 = vst [vmem:[#allocation2 + $0xd8] sm:$0xff] 0.0
    %46 = vst [vmem:[#allocation2 + $0xe0] sm:$0xff] 0.0
    %47 = vst [vmem:[#allocation2 + $0xe8] sm:$0xff] 0.0
    %48 = vst [vmem:[#allocation2 + $0xf0] sm:$0xff] 0.0
    %49 = vst [vmem:[#allocation2 + $0xf8] sm:$0xff] 0.0
    %50 = vst [vmem:[#allocation2 + $0x100] sm:$0xff] 0.0
    %51 = vst [vmem:[#allocation2 + $0x108] sm:$0xff] 0.0
    %52 = vst [vmem:[#allocation2 + $0x110] sm:$0xff] 0.0
    %53 = vst [vmem:[#allocation2 + $0x118] sm:$0xff] 0.0
    %54 = vst [vmem:[#allocation2 + $0x120] sm:$0xff] 0.0
    %55 = vst [vmem:[#allocation2 + $0x128] sm:$0xff] 0.0
    %56 = vst [vmem:[#allocation2 + $0x130] sm:$0xff] 0.0
    %57 = vst [vmem:[#allocation2 + $0x138] sm:$0xff] 0.0
    %58 = vst [vmem:[#allocation2 + $0x140] sm:$0xff] 0.0
    %59 = vst [vmem:[#allocation2 + $0x148] sm:$0xff] 0.0
    %60 = vst [vmem:[#allocation2 + $0x150] sm:$0xff] 0.0
    %61 = vst [vmem:[#allocation2 + $0x158] sm:$0xff] 0.0
    %62 = vst [vmem:[#allocation2 + $0x160] sm:$0xff] 0.0
    %63 = vst [vmem:[#allocation2 + $0x168] sm:$0xff] 0.0
    %64 = vst [vmem:[#allocation2 + $0x170] sm:$0xff] 0.0
    %65 = vst [vmem:[#allocation2 + $0x178] sm:$0xff] 0.0
    %66 = vst [vmem:[#allocation2 + $0x180] sm:$0xff] 0.0
    %67 = vst [vmem:[#allocation2 + $0x188] sm:$0xff] 0.0
    %68 = vst [vmem:[#allocation2 + $0x190] sm:$0xff] 0.0
    %69 = vst [vmem:[#allocation2 + $0x198] sm:$0xff] 0.0
    %70 = vst [vmem:[#allocation2 + $0x1a0] sm:$0xff] 0.0
    %71 = vst [vmem:[#allocation2 + $0x1a8] sm:$0xff] 0.0
    %72 = vst [vmem:[#allocation2 + $0x1b0] sm:$0xff] 0.0
    %73 = vst [vmem:[#allocation2 + $0x1b8] sm:$0xff] 0.0
    %74 = vst [vmem:[#allocation2 + $0x1c0] sm:$0xff] 0.0
    %75 = vst [vmem:[#allocation2 + $0x1c8] sm:$0xff] 0.0
    %76 = vst [vmem:[#allocation2 + $0x1d0] sm:$0xff] 0.0
    %77 = vst [vmem:[#allocation2 + $0x1d8] sm:$0xff] 0.0
    %78 = vst [vmem:[#allocation2 + $0x1e0] sm:$0xff] 0.0
    %79 = vst [vmem:[#allocation2 + $0x1e8] sm:$0xff] 0.0
    %80 = vst [vmem:[#allocation2 + $0x1f0] sm:$0xff] 0.0
    %81 = vst [vmem:[#allocation2 + $0x1f8] sm:$0xff] 0.0
  $region13: #{bottleneck_forward.7} parent=0 // pred_fallthru
    _
  %v82 = vld [vmem:[#allocation2] sm:$0xff]
  %v83 = vld [vmem:[#allocation2 + $0x8] sm:$0xff]
  %v84 = vld [vmem:[#allocation2 + $0x10] sm:$0xff]
  %v85 = vld [vmem:[#allocation2 + $0x18] sm:$0xff]
  %v86 = vld [vmem:[#allocation2 + $0x20] sm:$0xff]
  %v87 = vld [vmem:[#allocation2 + $0x28] sm:$0xff]
  %v88 = vld [vmem:[#allocation2 + $0x30] sm:$0xff]
  %v89 = vld [vmem:[#allocation2 + $0x38] sm:$0xff]
  %v90 = vld [vmem:[#allocation2 + $0x40] sm:$0xff]
  %v91 = vld [vmem:[#allocation2 + $0x48] sm:$0xff]
  %v92 = vld [vmem:[#allocation2 + $0x50] sm:$0xff]
  %v93 = vld [vmem:[#allocation2 + $0x58] sm:$0xff]
  %v94 = vld [vmem:[#allocation2 + $0x60] sm:$0xff]
  %v95 = vld [vmem:[#allocation2 + $0x68] sm:$0xff]
  %v96 = vld [vmem:[#allocation2 + $0x70] sm:$0xff]
  %v97 = vld [vmem:[#allocation2 + $0x78] sm:$0xff]
  %v98 = vld [vmem:[#allocation2 + $0x80] sm:$0xff]
  %v99 = vld [vmem:[#allocation2 + $0x88] sm:$0xff]
  %v100 = vld [vmem:[#allocation2 + $0x90] sm:$0xff]
  %v101 = vld [vmem:[#allocation2 + $0x98] sm:$0xff]
  %v102 = vld [vmem:[#allocation2 + $0xa0] sm:$0xff]
  %v103 = vld [vmem:[#allocation2 + $0xa8] sm:$0xff]
  %v104 = vld [vmem:[#allocation2 + $0xb0] sm:$0xff]
  %v105 = vld [vmem:[#allocation2 + $0xb8] sm:$0xff]
  %v106 = vld [vmem:[#allocation2 + $0xc0] sm:$0xff]
  %v107 = vld [vmem:[#allocation2 + $0xc8] sm:$0xff]
  %v108 = vld [vmem:[#allocation2 + $0xd0] sm:$0xff]
  %v109 = vld [vmem:[#allocation2 + $0xd8] sm:$0xff]
  %v110 = vld [vmem:[#allocation2 + $0xe0] sm:$0xff]
  %v111 = vld [vmem:[#allocation2 + $0xe8] sm:$0xff]
  %v112 = vld [vmem:[#allocation2 + $0xf0] sm:$0xff]
  %v113 = vld [vmem:[#allocation2 + $0xf8] sm:$0xff]
  %v114 = vld [vmem:[#allocation2 + $0x100] sm:$0xff]
  %v115 = vld [vmem:[#allocation2 + $0x108] sm:$0xff]
  %v116 = vld [vmem:[#allocation2 + $0x110] sm:$0xff]
  %v117 = vld [vmem:[#allocation2 + $0x118] sm:$0xff]
  %v118 = vld [vmem:[#allocation2 + $0x120] sm:$0xff]
  %v119 = vld [vmem:[#allocation2 + $0x128] sm:$0xff]
  %v120 = vld [vmem:[#allocation2 + $0x130] sm:$0xff]
  %v121 = vld [vmem:[#allocation2 + $0x138] sm:$0xff]
  %v122 = vld [vmem:[#allocation2 + $0x140] sm:$0xff]
  %v123 = vld [vmem:[#allocation2 + $0x148] sm:$0xff]
  %v124 = vld [vmem:[#allocation2 + $0x150] sm:$0xff]
  %v125 = vld [vmem:[#allocation2 + $0x158] sm:$0xff]
  %v126 = vld [vmem:[#allocation2 + $0x160] sm:$0xff]
  %v127 = vld [vmem:[#allocation2 + $0x168] sm:$0xff]
  %v128 = vld [vmem:[#allocation2 + $0x170] sm:$0xff]
  %v129 = vld [vmem:[#allocation2 + $0x178] sm:$0xff]
  %v130 = vld [vmem:[#allocation2 + $0x180] sm:$0xff]
  %v131 = vld [vmem:[#allocation2 + $0x188] sm:$0xff]
  %v132 = vld [vmem:[#allocation2 + $0x190] sm:$0xff]
  %v133 = vld [vmem:[#allocation2 + $0x198] sm:$0xff]
  %v134 = vld [vmem:[#allocation2 + $0x1a0] sm:$0xff]
  %v135 = vld [vmem:[#allocation2 + $0x1a8] sm:$0xff]
  %v136 = vld [vmem:[#allocation2 + $0x1b0] sm:$0xff]
  %v137 = vld [vmem:[#allocation2 + $0x1b8] sm:$0xff]
  %v138 = vld [vmem:[#allocation2 + $0x1c0] sm:$0xff]
  %v139 = vld [vmem:[#allocation2 + $0x1c8] sm:$0xff]
  %v140 = vld [vmem:[#allocation2 + $0x1d0] sm:$0xff]
  %v141 = vld [vmem:[#allocation2 + $0x1d8] sm:$0xff]
  %v142 = vld [vmem:[#allocation2 + $0x1e0] sm:$0xff]
  %v143 = vld [vmem:[#allocation2 + $0x1e8] sm:$0xff]
  %v144 = vld [vmem:[#allocation2 + $0x1f0] sm:$0xff]
  %v145 = vld [vmem:[#allocation2 + $0x1f8] sm:$0xff]
  %v146 = vld [vmem:[%s0] sm:$0xff]
  %v147 = vld [vmem:[%s0 + $0x8] sm:$0xff]
  %v148 = vld [vmem:[%s0 + $0x10] sm:$0xff]
  %v149 = vld [vmem:[%s0 + $0x18] sm:$0xff]
  %v150 = vld [vmem:[%s0 + $0x20] sm:$0xff]
  %v151 = vld [vmem:[%s0 + $0x28] sm:$0xff]
  %v152 = vld [vmem:[%s0 + $0x30] sm:$0xff]
  %v153 = vld [vmem:[%s0 + $0x38] sm:$0xff]
  %v154 = vld [vmem:[%s0 + $0x40] sm:$0xff]
  %v155 = vld [vmem:[%s0 + $0x48] sm:$0xff]
  %v156 = vld [vmem:[%s0 + $0x50] sm:$0xff]
  %v157 = vld [vmem:[%s0 + $0x58] sm:$0xff]
  %v158 = vld [vmem:[%s0 + $0x60] sm:$0xff]
  %v159 = vld [vmem:[%s0 + $0x68] sm:$0xff]
  %v160 = vld [vmem:[%s0 + $0x70] sm:$0xff]
  %v161 = vld [vmem:[%s0 + $0x78] sm:$0xff]
  %v162 = vld [vmem:[%s0 + $0x80] sm:$0xff]
  %v163 = vld [vmem:[%s0 + $0x88] sm:$0xff]
  %v164 = vld [vmem:[%s0 + $0x90] sm:$0xff]
  %v165 = vld [vmem:[%s0 + $0x98] sm:$0xff]
  %v166 = vld [vmem:[%s0 + $0xa0] sm:$0xff]
  %v167 = vld [vmem:[%s0 + $0xa8] sm:$0xff]
  %v168 = vld [vmem:[%s0 + $0xb0] sm:$0xff]
  %v169 = vld [vmem:[%s0 + $0xb8] sm:$0xff]
  %v170 = vld [vmem:[%s0 + $0xc0] sm:$0xff]
  %v171 = vld [vmem:[%s0 + $0xc8] sm:$0xff]
  %v172 = vld [vmem:[%s0 + $0xd0] sm:$0xff]
  %v173 = vld [vmem:[%s0 + $0xd8] sm:$0xff]
  %v174 = vld [vmem:[%s0 + $0xe0] sm:$0xff]
  %v175 = vld [vmem:[%s0 + $0xe8] sm:$0xff]
  %v176 = vld [vmem:[%s0 + $0xf0] sm:$0xff]
  %v177 = vld [vmem:[%s0 + $0xf8] sm:$0xff]
  %v178 = vld [vmem:[%s0 + $0x100] sm:$0xff]
  %v179 = vld [vmem:[%s0 + $0x108] sm:$0xff]
  %v180 = vld [vmem:[%s0 + $0x110] sm:$0xff]
  %v181 = vld [vmem:[%s0 + $0x118] sm:$0xff]
  %v182 = vld [vmem:[%s0 + $0x120] sm:$0xff]
  %v183 = vld [vmem:[%s0 + $0x128] sm:$0xff]
  %v184 = vld [vmem:[%s0 + $0x130] sm:$0xff]
  %v185 = vld [vmem:[%s0 + $0x138] sm:$0xff]
  %v186 = vld [vmem:[%s0 + $0x140] sm:$0xff]
  %v187 = vld [vmem:[%s0 + $0x148] sm:$0xff]
  %v188 = vld [vmem:[%s0 + $0x150] sm:$0xff]
  %v189 = vld [vmem:[%s0 + $0x158] sm:$0xff]
  %v190 = vld [vmem:[%s0 + $0x160] sm:$0xff]
  %v191 = vld [vmem:[%s0 + $0x168] sm:$0xff]
  %v192 = vld [vmem:[%s0 + $0x170] sm:$0xff]
  %v193 = vld [vmem:[%s0 + $0x178] sm:$0xff]
  %v194 = vld [vmem:[%s0 + $0x180] sm:$0xff]
  %v195 = vld [vmem:[%s0 + $0x188] sm:$0xff]
  %v196 = vld [vmem:[%s0 + $0x190] sm:$0xff]
  %v197 = vld [vmem:[%s0 + $0x198] sm:$0xff]
  %v198 = vld [vmem:[%s0 + $0x1a0] sm:$0xff]
  %v199 = vld [vmem:[%s0 + $0x1a8] sm:$0xff]
  %v200 = vld [vmem:[%s0 + $0x1b0] sm:$0xff]
  %v201 = vld [vmem:[%s0 + $0x1b8] sm:$0xff]
  %v202 = vld [vmem:[%s0 + $0x1c0] sm:$0xff]
  %v203 = vld [vmem:[%s0 + $0x1c8] sm:$0xff]
  %v204 = vld [vmem:[%s0 + $0x1d0] sm:$0xff]
  %v205 = vld [vmem:[%s0 + $0x1d8] sm:$0xff]
  %v206 = vld [vmem:[%s0 + $0x1e0] sm:$0xff]
  %v207 = vld [vmem:[%s0 + $0x1e8] sm:$0xff]
  %v208 = vld [vmem:[%s0 + $0x1f0] sm:$0xff]
  %v209 = vld [vmem:[%s0 + $0x1f8] sm:$0xff]
  %v210 = vld [vmem:[%s1] sm:$0xff]
  %v211 = vld [vmem:[%s1 + $0x8] sm:$0xff]
  %v212 = vld [vmem:[%s1 + $0x10] sm:$0xff]
  %v213 = vld [vmem:[%s1 + $0x18] sm:$0xff]
  %v214 = vld [vmem:[%s1 + $0x20] sm:$0xff]
  %v215 = vld [vmem:[%s1 + $0x28] sm:$0xff]
  %v216 = vld [vmem:[%s1 + $0x30] sm:$0xff]
  %v217 = vld [vmem:[%s1 + $0x38] sm:$0xff]
  %v218 = vld [vmem:[%s1 + $0x40] sm:$0xff]
  %v219 = vld [vmem:[%s1 + $0x48] sm:$0xff]
  %v220 = vld [vmem:[%s1 + $0x50] sm:$0xff]
  %v221 = vld [vmem:[%s1 + $0x58] sm:$0xff]
  %v222 = vld [vmem:[%s1 + $0x60] sm:$0xff]
  %v223 = vld [vmem:[%s1 + $0x68] sm:$0xff]
  %v224 = vld [vmem:[%s1 + $0x70] sm:$0xff]
  %v225 = vld [vmem:[%s1 + $0x78] sm:$0xff]
  %226 = vmatpush.msra.mxu0 %v225
  %227 = vmatpush.msra.mxu0 %v224
  %228 = vmatpush.msra.mxu0 %v223
  %229 = vmatpush.msra.mxu0 %v222
  %230 = vmatpush.msra.mxu0 %v221
  %231 = vmatpush.msra.mxu0 %v220
  %232 = vmatpush.msra.mxu0 %v219
  %233 = vmatpush.msra.mxu0 %v218
  %234 = vmatpush.msra.mxu0 %v217
  %235 = vmatpush.msra.mxu0 %v216
  %236 = vmatpush.msra.mxu0 %v215
  %237 = vmatpush.msra.mxu0 %v214
  %238 = vmatpush.msra.mxu0 %v213
  %239 = vmatpush.msra.mxu0 %v212
  %240 = vmatpush.msra.mxu0 %v211
  %241 = vmatpush.msra.mxu0 %v210
  %242 = vmatmul.f32.gmra.mxu0 %v146
  %v243 = vpop.f32.mrf.mxu0
  %v244 = vadd.f32 0.0, %v243
  %245 = vmatmul.f32.gmra.mxu0 %v147
  %v246 = vpop.f32.mrf.mxu0
  %v247 = vadd.f32 0.0, %v246
  %248 = vmatmul.f32.gmra.mxu0 %v148
  %v249 = vpop.f32.mrf.mxu0
  %v250 = vadd.f32 0.0, %v249
  %251 = vmatmul.f32.gmra.mxu0 %v149
  %v252 = vpop.f32.mrf.mxu0
  %v253 = vadd.f32 0.0, %v252
  %254 = vmatmul.f32.gmra.mxu0 %v150
  %v255 = vpop.f32.mrf.mxu0
  %v256 = vadd.f32 0.0, %v255
  %257 = vmatmul.f32.gmra.mxu0 %v151
  %v258 = vpop.f32.mrf.mxu0
  %v259 = vadd.f32 0.0, %v258
  %260 = vmatmul.f32.gmra.mxu0 %v152
  %v261 = vpop.f32.mrf.mxu0
  %v262 = vadd.f32 0.0, %v261
  %263 = vmatmul.f32.gmra.mxu0 %v153
  %v264 = vpop.f32.mrf.mxu0
  %v265 = vadd.f32 0.0, %v264
  %266 = vmatmul.f32.gmra.mxu0 %v154
  %v267 = vpop.f32.mrf.mxu0
  %v268 = vadd.f32 0.0, %v267
  %269 = vmatmul.f32.gmra.mxu0 %v155
  %v270 = vpop.f32.mrf.mxu0
  %v271 = vadd.f32 0.0, %v270
  %272 = vmatmul.f32.gmra.mxu0 %v156
  %v273 = vpop.f32.mrf.mxu0
  %v274 = vadd.f32 0.0, %v273
  %275 = vmatmul.f32.gmra.mxu0 %v157
  %v276 = vpop.f32.mrf.mxu0
  %v277 = vadd.f32 0.0, %v276
  %278 = vmatmul.f32.gmra.mxu0 %v158
  %v279 = vpop.f32.mrf.mxu0
  %v280 = vadd.f32 0.0, %v279
  %281 = vmatmul.f32.gmra.mxu0 %v159
  %v282 = vpop.f32.mrf.mxu0
  %v283 = vadd.f32 0.0, %v282
  %284 = vmatmul.f32.gmra.mxu0 %v160
  %v285 = vpop.f32.mrf.mxu0
  %v286 = vadd.f32 0.0, %v285
  %287 = vmatmul.f32.gmra.mxu0 %v161
  %v288 = vpop.f32.mrf.mxu0
  %v289 = vadd.f32 0.0, %v288
  %290 = vmatmul.f32.gmra.mxu0 %v162
  %v291 = vpop.f32.mrf.mxu0
  %v292 = vadd.f32 0.0, %v291
  %293 = vmatmul.f32.gmra.mxu0 %v163
  %v294 = vpop.f32.mrf.mxu0
  %v295 = vadd.f32 0.0, %v294
  %296 = vmatmul.f32.gmra.mxu0 %v164
  %v297 = vpop.f32.mrf.mxu0
  %v298 = vadd.f32 0.0, %v297
  %299 = vmatmul.f32.gmra.mxu0 %v165
  %v300 = vpop.f32.mrf.mxu0
  %v301 = vadd.f32 0.0, %v300
  %302 = vmatmul.f32.gmra.mxu0 %v166
  %v303 = vpop.f32.mrf.mxu0
  %v304 = vadd.f32 0.0, %v303
  %305 = vmatmul.f32.gmra.mxu0 %v167
  %v306 = vpop.f32.mrf.mxu0
  %v307 = vadd.f32 0.0, %v306
  %308 = vmatmul.f32.gmra.mxu0 %v168
  %v309 = vpop.f32.mrf.mxu0
  %v310 = vadd.f32 0.0, %v309
  %311 = vmatmul.f32.gmra.mxu0 %v169
  %v312 = vpop.f32.mrf.mxu0
  %v313 = vadd.f32 0.0, %v312
  %314 = vmatmul.f32.gmra.mxu0 %v170
  %v315 = vpop.f32.mrf.mxu0
  %v316 = vadd.f32 0.0, %v315
  %317 = vmatmul.f32.gmra.mxu0 %v171
  %v318 = vpop.f32.mrf.mxu0
  %v319 = vadd.f32 0.0, %v318
  %320 = vmatmul.f32.gmra.mxu0 %v172
  %v321 = vpop.f32.mrf.mxu0
  %v322 = vadd.f32 0.0, %v321
  %323 = vmatmul.f32.gmra.mxu0 %v173
  %v324 = vpop.f32.mrf.mxu0
  %v325 = vadd.f32 0.0, %v324
  %326 = vmatmul.f32.gmra.mxu0 %v174
  %v327 = vpop.f32.mrf.mxu0
  %v328 = vadd.f32 0.0, %v327
  %329 = vmatmul.f32.gmra.mxu0 %v175
  %v330 = vpop.f32.mrf.mxu0
  %v331 = vadd.f32 0.0, %v330
  %332 = vmatmul.f32.gmra.mxu0 %v176
  %v333 = vpop.f32.mrf.mxu0
  %v334 = vadd.f32 0.0, %v333
  %335 = vmatmul.f32.gmra.mxu0 %v177
  %v336 = vpop.f32.mrf.mxu0
  %v337 = vadd.f32 0.0, %v336
  %338 = vmatmul.f32.gmra.mxu0 %v178
  %v339 = vpop.f32.mrf.mxu0
  %v340 = vadd.f32 0.0, %v339
  %341 = vmatmul.f32.gmra.mxu0 %v179
  %v342 = vpop.f32.mrf.mxu0
  %v343 = vadd.f32 0.0, %v342
  %344 = vmatmul.f32.gmra.mxu0 %v180
  %v345 = vpop.f32.mrf.mxu0
  %v346 = vadd.f32 0.0, %v345
  %347 = vmatmul.f32.gmra.mxu0 %v181
  %v348 = vpop.f32.mrf.mxu0
  %v349 = vadd.f32 0.0, %v348
  %350 = vmatmul.f32.gmra.mxu0 %v182
  %v351 = vpop.f32.mrf.mxu0
  %v352 = vadd.f32 0.0, %v351
  %353 = vmatmul.f32.gmra.mxu0 %v183
  %v354 = vpop.f32.mrf.mxu0
  %v355 = vadd.f32 0.0, %v354
  %356 = vmatmul.f32.gmra.mxu0 %v184
  %v357 = vpop.f32.mrf.mxu0
  %v358 = vadd.f32 0.0, %v357
  %359 = vmatmul.f32.gmra.mxu0 %v185
  %v360 = vpop.f32.mrf.mxu0
  %v361 = vadd.f32 0.0, %v360
  %362 = vmatmul.f32.gmra.mxu0 %v186
  %v363 = vpop.f32.mrf.mxu0
  %v364 = vadd.f32 0.0, %v363
  %365 = vmatmul.f32.gmra.mxu0 %v187
  %v366 = vpop.f32.mrf.mxu0
  %v367 = vadd.f32 0.0, %v366
  %368 = vmatmul.f32.gmra.mxu0 %v188
  %v369 = vpop.f32.mrf.mxu0
  %v370 = vadd.f32 0.0, %v369
  %371 = vmatmul.f32.gmra.mxu0 %v189
  %v372 = vpop.f32.mrf.mxu0
  %v373 = vadd.f32 0.0, %v372
  %374 = vmatmul.f32.gmra.mxu0 %v190
  %v375 = vpop.f32.mrf.mxu0
  %v376 = vadd.f32 0.0, %v375
  %377 = vmatmul.f32.gmra.mxu0 %v191
  %v378 = vpop.f32.mrf.mxu0
  %v379 = vadd.f32 0.0, %v378
  %380 = vmatmul.f32.gmra.mxu0 %v192
  %v381 = vpop.f32.mrf.mxu0
  %v382 = vadd.f32 0.0, %v381
  %383 = vmatmul.f32.gmra.mxu0 %v193
  %v384 = vpop.f32.mrf.mxu0
  %v385 = vadd.f32 0.0, %v384
  %386 = vmatmul.f32.gmra.mxu0 %v194
  %v387 = vpop.f32.mrf.mxu0
  %v388 = vadd.f32 0.0, %v387
  %389 = vmatmul.f32.gmra.mxu0 %v195
  %v390 = vpop.f32.mrf.mxu0
  %v391 = vadd.f32 0.0, %v390
  %392 = vmatmul.f32.gmra.mxu0 %v196
  %v393 = vpop.f32.mrf.mxu0
  %v394 = vadd.f32 0.0, %v393
  %395 = vmatmul.f32.gmra.mxu0 %v197
  %v396 = vpop.f32.mrf.mxu0
  %v397 = vadd.f32 0.0, %v396
  %398 = vmatmul.f32.gmra.mxu0 %v198
  %v399 = vpop.f32.mrf.mxu0
  %v400 = vadd.f32 0.0, %v399
  %401 = vmatmul.f32.gmra.mxu0 %v199
  %v402 = vpop.f32.mrf.mxu0
  %v403 = vadd.f32 0.0, %v402
  %404 = vmatmul.f32.gmra.mxu0 %v200
  %v405 = vpop.f32.mrf.mxu0
  %v406 = vadd.f32 0.0, %v405
  %407 = vmatmul.f32.gmra.mxu0 %v201
  %v408 = vpop.f32.mrf.mxu0
  %v409 = vadd.f32 0.0, %v408
  %410 = vmatmul.f32.gmra.mxu0 %v202
  %v411 = vpop.f32.mrf.mxu0
  %v412 = vadd.f32 0.0, %v411
  %413 = vmatmul.f32.gmra.mxu0 %v203
  %v414 = vpop.f32.mrf.mxu0
  %v415 = vadd.f32 0.0, %v414
  %416 = vmatmul.f32.gmra.mxu0 %v204
  %v417 = vpop.f32.mrf.mxu0
  %v418 = vadd.f32 0.0, %v417
  %419 = vmatmul.f32.gmra.mxu0 %v205
  %v420 = vpop.f32.mrf.mxu0
  %v421 = vadd.f32 0.0, %v420
  %422 = vmatmul.f32.gmra.mxu0 %v206
  %v423 = vpop.f32.mrf.mxu0
  %v424 = vadd.f32 0.0, %v423
  %425 = vmatmul.f32.gmra.mxu0 %v207
  %v426 = vpop.f32.mrf.mxu0
  %v427 = vadd.f32 0.0, %v426
  %428 = vmatmul.f32.gmra.mxu0 %v208
  %v429 = vpop.f32.mrf.mxu0
  %v430 = vadd.f32 0.0, %v429
  %431 = vmatmul.f32.gmra.mxu0 %v209
  %v432 = vpop.f32.mrf.mxu0
  %v433 = vadd.f32 0.0, %v432
  %434 = vdwg.mxu0
  %v435 = vadd.f32 %v82, %v244
  %v436 = vadd.f32 %v83, %v247
  %v437 = vadd.f32 %v84, %v250
  %v438 = vadd.f32 %v85, %v253
  %v439 = vadd.f32 %v86, %v256
  %v440 = vadd.f32 %v87, %v259
  %v441 = vadd.f32 %v88, %v262
  %v442 = vadd.f32 %v89, %v265
  %v443 = vadd.f32 %v90, %v268
  %v444 = vadd.f32 %v91, %v271
  %v445 = vadd.f32 %v92, %v274
  %v446 = vadd.f32 %v93, %v277
  %v447 = vadd.f32 %v94, %v280
  %v448 = vadd.f32 %v95, %v283
  %v449 = vadd.f32 %v96, %v286
  %v450 = vadd.f32 %v97, %v289
  %v451 = vadd.f32 %v98, %v292
  %v452 = vadd.f32 %v99, %v295
  %v453 = vadd.f32 %v100, %v298
  %v454 = vadd.f32 %v101, %v301
  %v455 = vadd.f32 %v102, %v304
  %v456 = vadd.f32 %v103, %v307
  %v457 = vadd.f32 %v104, %v310
  %v458 = vadd.f32 %v105, %v313
  %v459 = vadd.f32 %v106, %v316
  %v460 = vadd.f32 %v107, %v319
  %v461 = vadd.f32 %v108, %v322
  %v462 = vadd.f32 %v109, %v325
  %v463 = vadd.f32 %v110, %v328
  %v464 = vadd.f32 %v111, %v331
  %v465 = vadd.f32 %v112, %v334
  %v466 = vadd.f32 %v113, %v337
  %v467 = vadd.f32 %v114, %v340
  %v468 = vadd.f32 %v115, %v343
  %v469 = vadd.f32 %v116, %v346
  %v470 = vadd.f32 %v117, %v349
  %v471 = vadd.f32 %v118, %v352
  %v472 = vadd.f32 %v119, %v355
  %v473 = vadd.f32 %v120, %v358
  %v474 = vadd.f32 %v121, %v361
  %v475 = vadd.f32 %v122, %v364
  %v476 = vadd.f32 %v123, %v367
  %v477 = vadd.f32 %v124, %v370
  %v478 = vadd.f32 %v125, %v373
  %v479 = vadd.f32 %v126, %v376
  %v480 = vadd.f32 %v127, %v379
  %v481 = vadd.f32 %v128, %v382
  %v482 = vadd.f32 %v129, %v385
  %v483 = vadd.f32 %v130, %v388
  %v484 = vadd.f32 %v131, %v391
  %v485 = vadd.f32 %v132, %v394
  %v486 = vadd.f32 %v133, %v397
  %v487 = vadd.f32 %v134, %v400
  %v488 = vadd.f32 %v135, %v403
  %v489 = vadd.f32 %v136, %v406
  %v490 = vadd.f32 %v137, %v409
  %v491 = vadd.f32 %v138, %v412
  %v492 = vadd.f32 %v139, %v415
  %v493 = vadd.f32 %v140, %v418
  %v494 = vadd.f32 %v141, %v421
  %v495 = vadd.f32 %v142, %v424
  %v496 = vadd.f32 %v143, %v427
  %v497 = vadd.f32 %v144, %v430
  %v498 = vadd.f32 %v145, %v433
  %499 = vst [vmem:[#allocation2] sm:$0xff] %v435
  %500 = vst [vmem:[#allocation2 + $0x8] sm:$0xff] %v436
  %501 = vst [vmem:[#allocation2 + $0x10] sm:$0xff] %v437
  %502 = vst [vmem:[#allocation2 + $0x18] sm:$0xff] %v438
  %503 = vst [vmem:[#allocation2 + $0x20] sm:$0xff] %v439
  %504 = vst [vmem:[#allocation2 + $0x28] sm:$0xff] %v440
  %505 = vst [vmem:[#allocation2 + $0x30] sm:$0xff] %v441
  %506 = vst [vmem:[#allocation2 + $0x38] sm:$0xff] %v442
  %507 = vst [vmem:[#allocation2 + $0x40] sm:$0xff] %v443
  %508 = vst [vmem:[#allocation2 + $0x48] sm:$0xff] %v444
  %509 = vst [vmem:[#allocation2 + $0x50] sm:$0xff] %v445
  %510 = vst [vmem:[#allocation2 + $0x58] sm:$0xff] %v446
  %511 = vst [vmem:[#allocation2 + $0x60] sm:$0xff] %v447
  %512 = vst [vmem:[#allocation2 + $0x68] sm:$0xff] %v448
  %513 = vst [vmem:[#allocation2 + $0x70] sm:$0xff] %v449
  %514 = vst [vmem:[#allocation2 + $0x78] sm:$0xff] %v450
  %515 = vst [vmem:[#allocation2 + $0x80] sm:$0xff] %v451
  %516 = vst [vmem:[#allocation2 + $0x88] sm:$0xff] %v452
  %517 = vst [vmem:[#allocation2 + $0x90] sm:$0xff] %v453
  %518 = vst [vmem:[#allocation2 + $0x98] sm:$0xff] %v454
  %519 = vst [vmem:[#allocation2 + $0xa0] sm:$0xff] %v455
  %520 = vst [vmem:[#allocation2 + $0xa8] sm:$0xff] %v456
  %521 = vst [vmem:[#allocation2 + $0xb0] sm:$0xff] %v457
  %522 = vst [vmem:[#allocation2 + $0xb8] sm:$0xff] %v458
  %523 = vst [vmem:[#allocation2 + $0xc0] sm:$0xff] %v459
  %524 = vst [vmem:[#allocation2 + $0xc8] sm:$0xff] %v460
  %525 = vst [vmem:[#allocation2 + $0xd0] sm:$0xff] %v461
  %526 = vst [vmem:[#allocation2 + $0xd8] sm:$0xff] %v462
  %527 = vst [vmem:[#allocation2 + $0xe0] sm:$0xff] %v463
  %528 = vst [vmem:[#allocation2 + $0xe8] sm:$0xff] %v464
  %529 = vst [vmem:[#allocation2 + $0xf0] sm:$0xff] %v465
  %530 = vst [vmem:[#allocation2 + $0xf8] sm:$0xff] %v466
  %531 = vst [vmem:[#allocation2 + $0x100] sm:$0xff] %v467
  %532 = vst [vmem:[#allocation2 + $0x108] sm:$0xff] %v468
  %533 = vst [vmem:[#allocation2 + $0x110] sm:$0xff] %v469
  %534 = vst [vmem:[#allocation2 + $0x118] sm:$0xff] %v470
  %535 = vst [vmem:[#allocation2 + $0x120] sm:$0xff] %v471
  %536 = vst [vmem:[#allocation2 + $0x128] sm:$0xff] %v472
  %537 = vst [vmem:[#allocation2 + $0x130] sm:$0xff] %v473
  %538 = vst [vmem:[#allocation2 + $0x138] sm:$0xff] %v474
  %539 = vst [vmem:[#allocation2 + $0x140] sm:$0xff] %v475
  %540 = vst [vmem:[#allocation2 + $0x148] sm:$0xff] %v476
  %541 = vst [vmem:[#allocation2 + $0x150] sm:$0xff] %v477
  %542 = vst [vmem:[#allocation2 + $0x158] sm:$0xff] %v478
  %543 = vst [vmem:[#allocation2 + $0x160] sm:$0xff] %v479
  %544 = vst [vmem:[#allocation2 + $0x168] sm:$0xff] %v480
  %545 = vst [vmem:[#allocation2 + $0x170] sm:$0xff] %v481
  %546 = vst [vmem:[#allocation2 + $0x178] sm:$0xff] %v482
  %547 = vst [vmem:[#allocation2 + $0x180] sm:$0xff] %v483
  %548 = vst [vmem:[#allocation2 + $0x188] sm:$0xff] %v484
  %549 = vst [vmem:[#allocation2 + $0x190] sm:$0xff] %v485
  %550 = vst [vmem:[#allocation2 + $0x198] sm:$0xff] %v486
  %551 = vst [vmem:[#allocation2 + $0x1a0] sm:$0xff] %v487
  %552 = vst [vmem:[#allocation2 + $0x1a8] sm:$0xff] %v488
  %553 = vst [vmem:[#allocation2 + $0x1b0] sm:$0xff] %v489
  %554 = vst [vmem:[#allocation2 + $0x1b8] sm:$0xff] %v490
  %555 = vst [vmem:[#allocation2 + $0x1c0] sm:$0xff] %v491
  %556 = vst [vmem:[#allocation2 + $0x1c8] sm:$0xff] %v492
  %557 = vst [vmem:[#allocation2 + $0x1d0] sm:$0xff] %v493
  %558 = vst [vmem:[#allocation2 + $0x1d8] sm:$0xff] %v494
  %559 = vst [vmem:[#allocation2 + $0x1e0] sm:$0xff] %v495
  %560 = vst [vmem:[#allocation2 + $0x1e8] sm:$0xff] %v496
  %561 = vst [vmem:[#allocation2 + $0x1f0] sm:$0xff] %v497
  %562 = vst [vmem:[#allocation2 + $0x1f8] sm:$0xff] %v498
  %p563 = scmp.eq.s32.totalorder 0, 0
  %p564 = pnand %p14, %p563
  %p565 = pneg %p564
  // Predicated region
  $region14: #{bottleneck_forward.7} parent=0 // pred_check
    _
  $region15: #{bottleneck_forward.7} parent=0 // pred_check_branch
    %567 = sbr.rel (%p564) target = $region17
  $region16: #{bottleneck_forward.7} parent=0 // pred_region
    %568 = vst [vmem:[%s3] sm:$0x1] 0.0
    %569 = vst [vmem:[%s4] sm:$0x1] 0.0
  $region17: #{bottleneck_forward.7} parent=0 // pred_fallthru
    _
  // Predicated region
  $region18: #{bottleneck_forward.7} parent=0 // pred_check
    %p570 = pneg %p14
  $region19: #{bottleneck_forward.7} parent=0 // pred_check_branch
    %572 = sbr.rel (%p570) target = $region21
  $region20: #{bottleneck_forward.7} parent=0 // pred_region
    %v573 = vld [vmem:[#allocation2] sm:$0xff]
    %v574 = vld [vmem:[#allocation2 + $0x8] sm:$0xff]
    %v575 = vld [vmem:[#allocation2 + $0x10] sm:$0xff]
    %v576 = vld [vmem:[#allocation2 + $0x18] sm:$0xff]
    %v577 = vld [vmem:[#allocation2 + $0x20] sm:$0xff]
    %v578 = vld [vmem:[#allocation2 + $0x28] sm:$0xff]
    %v579 = vld [vmem:[#allocation2 + $0x30] sm:$0xff]
    %v580 = vld [vmem:[#allocation2 + $0x38] sm:$0xff]
    %v581 = vld [vmem:[#allocation2 + $0x40] sm:$0xff]
    %v582 = vld [vmem:[#allocation2 + $0x48] sm:$0xff]
    %v583 = vld [vmem:[#allocation2 + $0x50] sm:$0xff]
    %v584 = vld [vmem:[#allocation2 + $0x58] sm:$0xff]
    %v585 = vld [vmem:[#allocation2 + $0x60] sm:$0xff]
    %v586 = vld [vmem:[#allocation2 + $0x68] sm:$0xff]
    %v587 = vld [vmem:[#allocation2 + $0x70] sm:$0xff]
    %v588 = vld [vmem:[#allocation2 + $0x78] sm:$0xff]
    %v589 = vld [vmem:[#allocation2 + $0x80] sm:$0xff]
    %v590 = vld [vmem:[#allocation2 + $0x88] sm:$0xff]
    %v591 = vld [vmem:[#allocation2 + $0x90] sm:$0xff]
    %v592 = vld [vmem:[#allocation2 + $0x98] sm:$0xff]
    %v593 = vld [vmem:[#allocation2 + $0xa0] sm:$0xff]
    %v594 = vld [vmem:[#allocation2 + $0xa8] sm:$0xff]
    %v595 = vld [vmem:[#allocation2 + $0xb0] sm:$0xff]
    %v596 = vld [vmem:[#allocation2 + $0xb8] sm:$0xff]
    %v597 = vld [vmem:[#allocation2 + $0xc0] sm:$0xff]
    %v598 = vld [vmem:[#allocation2 + $0xc8] sm:$0xff]
    %v599 = vld [vmem:[#allocation2 + $0xd0] sm:$0xff]
    %v600 = vld [vmem:[#allocation2 + $0xd8] sm:$0xff]
    %v601 = vld [vmem:[#allocation2 + $0xe0] sm:$0xff]
    %v602 = vld [vmem:[#allocation2 + $0xe8] sm:$0xff]
    %v603 = vld [vmem:[#allocation2 + $0xf0] sm:$0xff]
    %v604 = vld [vmem:[#allocation2 + $0xf8] sm:$0xff]
    %v605 = vld [vmem:[#allocation2 + $0x100] sm:$0xff]
    %v606 = vld [vmem:[#allocation2 + $0x108] sm:$0xff]
    %v607 = vld [vmem:[#allocation2 + $0x110] sm:$0xff]
    %v608 = vld [vmem:[#allocation2 + $0x118] sm:$0xff]
    %v609 = vld [vmem:[#allocation2 + $0x120] sm:$0xff]
    %v610 = vld [vmem:[#allocation2 + $0x128] sm:$0xff]
    %v611 = vld [vmem:[#allocation2 + $0x130] sm:$0xff]
    %v612 = vld [vmem:[#allocation2 + $0x138] sm:$0xff]
    %v613 = vld [vmem:[#allocation2 + $0x140] sm:$0xff]
    %v614 = vld [vmem:[#allocation2 + $0x148] sm:$0xff]
    %v615 = vld [vmem:[#allocation2 + $0x150] sm:$0xff]
    %v616 = vld [vmem:[#allocation2 + $0x158] sm:$0xff]
    %v617 = vld [vmem:[#allocation2 + $0x160] sm:$0xff]
    %v618 = vld [vmem:[#allocation2 + $0x168] sm:$0xff]
    %v619 = vld [vmem:[#allocation2 + $0x170] sm:$0xff]
    %v620 = vld [vmem:[#allocation2 + $0x178] sm:$0xff]
    %v621 = vld [vmem:[#allocation2 + $0x180] sm:$0xff]
    %v622 = vld [vmem:[#allocation2 + $0x188] sm:$0xff]
    %v623 = vld [vmem:[#allocation2 + $0x190] sm:$0xff]
    %v624 = vld [vmem:[#allocation2 + $0x198] sm:$0xff]
    %v625 = vld [vmem:[#allocation2 + $0x1a0] sm:$0xff]
    %v626 = vld [vmem:[#allocation2 + $0x1a8] sm:$0xff]
    %v627 = vld [vmem:[#allocation2 + $0x1b0] sm:$0xff]
    %v628 = vld [vmem:[#allocation2 + $0x1b8] sm:$0xff]
    %v629 = vld [vmem:[#allocation2 + $0x1c0] sm:$0xff]
    %v630 = vld [vmem:[#allocation2 + $0x1c8] sm:$0xff]
    %v631 = vld [vmem:[#allocation2 + $0x1d0] sm:$0xff]
    %v632 = vld [vmem:[#allocation2 + $0x1d8] sm:$0xff]
    %v633 = vld [vmem:[#allocation2 + $0x1e0] sm:$0xff]
    %v634 = vld [vmem:[#allocation2 + $0x1e8] sm:$0xff]
    %v635 = vld [vmem:[#allocation2 + $0x1f0] sm:$0xff]
    %v636 = vld [vmem:[#allocation2 + $0x1f8] sm:$0xff]
    %637 = vst [vmem:[%s2] sm:$0xff] %v573
    %638 = vst [vmem:[%s2 + $0x8] sm:$0xff] %v574
    %639 = vst [vmem:[%s2 + $0x10] sm:$0xff] %v575
    %640 = vst [vmem:[%s2 + $0x18] sm:$0xff] %v576
    %641 = vst [vmem:[%s2 + $0x20] sm:$0xff] %v577
    %642 = vst [vmem:[%s2 + $0x28] sm:$0xff] %v578
    %643 = vst [vmem:[%s2 + $0x30] sm:$0xff] %v579
    %644 = vst [vmem:[%s2 + $0x38] sm:$0xff] %v580
    %645 = vst [vmem:[%s2 + $0x40] sm:$0xff] %v581
    %646 = vst [vmem:[%s2 + $0x48] sm:$0xff] %v582
    %647 = vst [vmem:[%s2 + $0x50] sm:$0xff] %v583
    %648 = vst [vmem:[%s2 + $0x58] sm:$0xff] %v584
    %649 = vst [vmem:[%s2 + $0x60] sm:$0xff] %v585
    %650 = vst [vmem:[%s2 + $0x68] sm:$0xff] %v586
    %651 = vst [vmem:[%s2 + $0x70] sm:$0xff] %v587
    %652 = vst [vmem:[%s2 + $0x78] sm:$0xff] %v588
    %653 = vst [vmem:[%s2 + $0x80] sm:$0xff] %v589
    %654 = vst [vmem:[%s2 + $0x88] sm:$0xff] %v590
    %655 = vst [vmem:[%s2 + $0x90] sm:$0xff] %v591
    %656 = vst [vmem:[%s2 + $0x98] sm:$0xff] %v592
    %657 = vst [vmem:[%s2 + $0xa0] sm:$0xff] %v593
    %658 = vst [vmem:[%s2 + $0xa8] sm:$0xff] %v594
    %659 = vst [vmem:[%s2 + $0xb0] sm:$0xff] %v595
    %660 = vst [vmem:[%s2 + $0xb8] sm:$0xff] %v596
    %661 = vst [vmem:[%s2 + $0xc0] sm:$0xff] %v597
    %662 = vst [vmem:[%s2 + $0xc8] sm:$0xff] %v598
    %663 = vst [vmem:[%s2 + $0xd0] sm:$0xff] %v599
    %664 = vst [vmem:[%s2 + $0xd8] sm:$0xff] %v600
    %665 = vst [vmem:[%s2 + $0xe0] sm:$0xff] %v601
    %666 = vst [vmem:[%s2 + $0xe8] sm:$0xff] %v602
    %667 = vst [vmem:[%s2 + $0xf0] sm:$0xff] %v603
    %668 = vst [vmem:[%s2 + $0xf8] sm:$0xff] %v604
    %669 = vst [vmem:[%s2 + $0x100] sm:$0xff] %v605
    %670 = vst [vmem:[%s2 + $0x108] sm:$0xff] %v606
    %671 = vst [vmem:[%s2 + $0x110] sm:$0xff] %v607
    %672 = vst [vmem:[%s2 + $0x118] sm:$0xff] %v608
    %673 = vst [vmem:[%s2 + $0x120] sm:$0xff] %v609
    %674 = vst [vmem:[%s2 + $0x128] sm:$0xff] %v610
    %675 = vst [vmem:[%s2 + $0x130] sm:$0xff] %v611
    %676 = vst [vmem:[%s2 + $0x138] sm:$0xff] %v612
    %677 = vst [vmem:[%s2 + $0x140] sm:$0xff] %v613
    %678 = vst [vmem:[%s2 + $0x148] sm:$0xff] %v614
    %679 = vst [vmem:[%s2 + $0x150] sm:$0xff] %v615
    %680 = vst [vmem:[%s2 + $0x158] sm:$0xff] %v616
    %681 = vst [vmem:[%s2 + $0x160] sm:$0xff] %v617
    %682 = vst [vmem:[%s2 + $0x168] sm:$0xff] %v618
    %683 = vst [vmem:[%s2 + $0x170] sm:$0xff] %v619
    %684 = vst [vmem:[%s2 + $0x178] sm:$0xff] %v620
    %685 = vst [vmem:[%s2 + $0x180] sm:$0xff] %v621
    %686 = vst [vmem:[%s2 + $0x188] sm:$0xff] %v622
    %687 = vst [vmem:[%s2 + $0x190] sm:$0xff] %v623
    %688 = vst [vmem:[%s2 + $0x198] sm:$0xff] %v624
    %689 = vst [vmem:[%s2 + $0x1a0] sm:$0xff] %v625
    %690 = vst [vmem:[%s2 + $0x1a8] sm:$0xff] %v626
    %691 = vst [vmem:[%s2 + $0x1b0] sm:$0xff] %v627
    %692 = vst [vmem:[%s2 + $0x1b8] sm:$0xff] %v628
    %693 = vst [vmem:[%s2 + $0x1c0] sm:$0xff] %v629
    %694 = vst [vmem:[%s2 + $0x1c8] sm:$0xff] %v630
    %695 = vst [vmem:[%s2 + $0x1d0] sm:$0xff] %v631
    %696 = vst [vmem:[%s2 + $0x1d8] sm:$0xff] %v632
    %697 = vst [vmem:[%s2 + $0x1e0] sm:$0xff] %v633
    %698 = vst [vmem:[%s2 + $0x1e8] sm:$0xff] %v634
    %699 = vst [vmem:[%s2 + $0x1f0] sm:$0xff] %v635
    %700 = vst [vmem:[%s2 + $0x1f8] sm:$0xff] %v636
    %v701 = vld [vmem:[%s3] sm:$0x1]
    %v702 = vadd.f32 %v573, %v574
    %v703 = vadd.f32 %v702, %v575
    %v704 = vadd.f32 %v703, %v576
    %v705 = vadd.f32 %v704, %v577
    %v706 = vadd.f32 %v705, %v578
    %v707 = vadd.f32 %v706, %v579
    %v708 = vadd.f32 %v707, %v580
    %v709 = vadd.f32 %v708, %v581
    %v710 = vadd.f32 %v709, %v582
    %v711 = vadd.f32 %v710, %v583
    %v712 = vadd.f32 %v711, %v584
    %v713 = vadd.f32 %v712, %v585
    %v714 = vadd.f32 %v713, %v586
    %v715 = vadd.f32 %v714, %v587
    %v716 = vadd.f32 %v715, %v588
    %v717 = vadd.f32 %v716, %v589
    %v718 = vadd.f32 %v717, %v590
    %v719 = vadd.f32 %v718, %v591
    %v720 = vadd.f32 %v719, %v592
    %v721 = vadd.f32 %v720, %v593
    %v722 = vadd.f32 %v721, %v594
    %v723 = vadd.f32 %v722, %v595
    %v724 = vadd.f32 %v723, %v596
    %v725 = vadd.f32 %v724, %v597
    %v726 = vadd.f32 %v725, %v598
    %v727 = vadd.f32 %v726, %v599
    %v728 = vadd.f32 %v727, %v600
    %v729 = vadd.f32 %v728, %v601
    %v730 = vadd.f32 %v729, %v602
    %v731 = vadd.f32 %v730, %v603
    %v732 = vadd.f32 %v731, %v604
    %v733 = vadd.f32 %v732, %v605
    %v734 = vadd.f32 %v733, %v606
    %v735 = vadd.f32 %v734, %v607
    %v736 = vadd.f32 %v735, %v608
    %v737 = vadd.f32 %v736, %v609
    %v738 = vadd.f32 %v737, %v610
    %v739 = vadd.f32 %v738, %v611
    %v740 = vadd.f32 %v739, %v612
    %v741 = vadd.f32 %v740, %v613
    %v742 = vadd.f32 %v741, %v614
    %v743 = vadd.f32 %v742, %v615
    %v744 = vadd.f32 %v743, %v616
    %v745 = vadd.f32 %v744, %v617
    %v746 = vadd.f32 %v745, %v618
    %v747 = vadd.f32 %v746, %v619
    %v748 = vadd.f32 %v747, %v620
    %v749 = vadd.f32 %v748, %v621
    %v750 = vadd.f32 %v749, %v622
    %v751 = vadd.f32 %v750, %v623
    %v752 = vadd.f32 %v751, %v624
    %v753 = vadd.f32 %v752, %v625
    %v754 = vadd.f32 %v753, %v626
    %v755 = vadd.f32 %v754, %v627
    %v756 = vadd.f32 %v755, %v628
    %v757 = vadd.f32 %v756, %v629
    %v758 = vadd.f32 %v757, %v630
    %v759 = vadd.f32 %v758, %v631
    %v760 = vadd.f32 %v759, %v632
    %v761 = vadd.f32 %v760, %v633
    %v762 = vadd.f32 %v761, %v634
    %v763 = vadd.f32 %v762, %v635
    %v764 = vadd.f32 %v763, %v636
    %v765 = vrot.slane %v764, 4
    %v766 = vadd.f32 %v764, %v765
    %v767 = vrot.slane %v766, 2
    %v768 = vadd.f32 %v766, %v767
    %v769 = vrot.slane %v768, 1
    %v770 = vadd.f32 %v768, %v769
    %v771 = vadd.f32 %v701, %v770
    %772 = vst [vmem:[%s3] sm:$0x1] %v771
    %v773 = vld [vmem:[%s4] sm:$0x1]
    %v774 = vmul.f32 %v573, %v573
    %v775 = vmul.f32 %v574, %v574
    %v776 = vmul.f32 %v575, %v575
    %v777 = vmul.f32 %v576, %v576
    %v778 = vmul.f32 %v577, %v577
    %v779 = vmul.f32 %v578, %v578
    %v780 = vmul.f32 %v579, %v579
    %v781 = vmul.f32 %v580, %v580
    %v782 = vmul.f32 %v581, %v581
    %v783 = vmul.f32 %v582, %v582
    %v784 = vmul.f32 %v583, %v583
    %v785 = vmul.f32 %v584, %v584
    %v786 = vmul.f32 %v585, %v585
    %v787 = vmul.f32 %v586, %v586
    %v788 = vmul.f32 %v587, %v587
    %v789 = vmul.f32 %v588, %v588
    %v790 = vmul.f32 %v589, %v589
    %v791 = vmul.f32 %v590, %v590
    %v792 = vmul.f32 %v591, %v591
    %v793 = vmul.f32 %v592, %v592
    %v794 = vmul.f32 %v593, %v593
    %v795 = vmul.f32 %v594, %v594
    %v796 = vmul.f32 %v595, %v595
    %v797 = vmul.f32 %v596, %v596
    %v798 = vmul.f32 %v597, %v597
    %v799 = vmul.f32 %v598, %v598
    %v800 = vmul.f32 %v599, %v599
    %v801 = vmul.f32 %v600, %v600
    %v802 = vmul.f32 %v601, %v601
    %v803 = vmul.f32 %v602, %v602
    %v804 = vmul.f32 %v603, %v603
    %v805 = vmul.f32 %v604, %v604
    %v806 = vmul.f32 %v605, %v605
    %v807 = vmul.f32 %v606, %v606
    %v808 = vmul.f32 %v607, %v607
    %v809 = vmul.f32 %v608, %v608
    %v810 = vmul.f32 %v609, %v609
    %v811 = vmul.f32 %v610, %v610
    %v812 = vmul.f32 %v611, %v611
    %v813 = vmul.f32 %v612, %v612
    %v814 = vmul.f32 %v613, %v613
    %v815 = vmul.f32 %v614, %v614
    %v816 = vmul.f32 %v615, %v615
    %v817 = vmul.f32 %v616, %v616
    %v818 = vmul.f32 %v617, %v617
    %v819 = vmul.f32 %v618, %v618
    %v820 = vmul.f32 %v619, %v619
    %v821 = vmul.f32 %v620, %v620
    %v822 = vmul.f32 %v621, %v621
    %v823 = vmul.f32 %v622, %v622
    %v824 = vmul.f32 %v623, %v623
    %v825 = vmul.f32 %v624, %v624
    %v826 = vmul.f32 %v625, %v625
    %v827 = vmul.f32 %v626, %v626
    %v828 = vmul.f32 %v627, %v627
    %v829 = vmul.f32 %v628, %v628
    %v830 = vmul.f32 %v629, %v629
    %v831 = vmul.f32 %v630, %v630
    %v832 = vmul.f32 %v631, %v631
    %v833 = vmul.f32 %v632, %v632
    %v834 = vmul.f32 %v633, %v633
    %v835 = vmul.f32 %v634, %v634
    %v836 = vmul.f32 %v635, %v635
    %v837 = vmul.f32 %v636, %v636
    %v838 = vadd.f32 %v774, %v775
    %v839 = vadd.f32 %v838, %v776
    %v840 = vadd.f32 %v839, %v777
    %v841 = vadd.f32 %v840, %v778
    %v842 = vadd.f32 %v841, %v779
    %v843 = vadd.f32 %v842, %v780
    %v844 = vadd.f32 %v843, %v781
    %v845 = vadd.f32 %v844, %v782
    %v846 = vadd.f32 %v845, %v783
    %v847 = vadd.f32 %v846, %v784
    %v848 = vadd.f32 %v847, %v785
    %v849 = vadd.f32 %v848, %v786
    %v850 = vadd.f32 %v849, %v787
    %v851 = vadd.f32 %v850, %v788
    %v852 = vadd.f32 %v851, %v789
    %v853 = vadd.f32 %v852, %v790
    %v854 = vadd.f32 %v853, %v791
    %v855 = vadd.f32 %v854, %v792
    %v856 = vadd.f32 %v855, %v793
    %v857 = vadd.f32 %v856, %v794
    %v858 = vadd.f32 %v857, %v795
    %v859 = vadd.f32 %v858, %v796
    %v860 = vadd.f32 %v859, %v797
    %v861 = vadd.f32 %v860, %v798
    %v862 = vadd.f32 %v861, %v799
    %v863 = vadd.f32 %v862, %v800
    %v864 = vadd.f32 %v863, %v801
    %v865 = vadd.f32 %v864, %v802
    %v866 = vadd.f32 %v865, %v803
    %v867 = vadd.f32 %v866, %v804
    %v868 = vadd.f32 %v867, %v805
    %v869 = vadd.f32 %v868, %v806
    %v870 = vadd.f32 %v869, %v807
    %v871 = vadd.f32 %v870, %v808
    %v872 = vadd.f32 %v871, %v809
    %v873 = vadd.f32 %v872, %v810
    %v874 = vadd.f32 %v873, %v811
    %v875 = vadd.f32 %v874, %v812
    %v876 = vadd.f32 %v875, %v813
    %v877 = vadd.f32 %v876, %v814
    %v878 = vadd.f32 %v877, %v815
    %v879 = vadd.f32 %v878, %v816
    %v880 = vadd.f32 %v879, %v817
    %v881 = vadd.f32 %v880, %v818
    %v882 = vadd.f32 %v881, %v819
    %v883 = vadd.f32 %v882, %v820
    %v884 = vadd.f32 %v883, %v821
    %v885 = vadd.f32 %v884, %v822
    %v886 = vadd.f32 %v885, %v823
    %v887 = vadd.f32 %v886, %v824
    %v888 = vadd.f32 %v887, %v825
    %v889 = vadd.f32 %v888, %v826
    %v890 = vadd.f32 %v889, %v827
    %v891 = vadd.f32 %v890, %v828
    %v892 = vadd.f32 %v891, %v829
    %v893 = vadd.f32 %v892, %v830
    %v894 = vadd.f32 %v893, %v831
    %v895 = vadd.f32 %v894, %v832
    %v896 = vadd.f32 %v895, %v833
    %v897 = vadd.f32 %v896, %v834
    %v898 = vadd.f32 %v897, %v835
    %v899 = vadd.f32 %v898, %v836
    %v900 = vadd.f32 %v899, %v837
    %v901 = vrot.slane %v900, 4
    %v902 = vadd.f32 %v900, %v901
    %v903 = vrot.slane %v902, 2
    %v904 = vadd.f32 %v902, %v903
    %v905 = vrot.slane %v904, 1
    %v906 = vadd.f32 %v904, %v905
    %v907 = vadd.f32 %v773, %v906
    %908 = vst [vmem:[%s4] sm:$0x1] %v907
  $region21: #{bottleneck_forward.7} parent=0 // pred_fallthru
    _
  // Predicated region
  $region22: #{bottleneck_forward.7} parent=0 // pred_check
    _
  $region23: #{bottleneck_forward.7} parent=0 // pred_check_branch
    %910 = sbr.rel (0) target = $region25
  $region24: #{bottleneck_forward.7} parent=0 // pred_region
    _
  $region25: #{bottleneck_forward.7} parent=0 // pred_fallthru
    _
  // Predicated region
  $region26: #{bottleneck_forward.7} parent=0 // pred_check
    _
  $region27: #{bottleneck_forward.7} parent=0 // pred_check_branch
    %912 = sbr.rel (0) target = $region29
  $region28: #{bottleneck_forward.7} parent=0 // pred_region
    _
  $region29: #{bottleneck_forward.7} parent=0 // pred_fallthru
    _
  // Predicated region
  $region30: #{bottleneck_forward.7} parent=0 // pred_check
    _
  $region31: #{bottleneck_forward.7} parent=0 // pred_check_branch
    %914 = sbr.rel (0) target = $region33
  $region32: #{bottleneck_forward.7} parent=0 // pred_region
    _
  $region33: #{bottleneck_forward.7} parent=0 // pred_fallthru
    _
  // Predicated region
  $region34: #{bottleneck_forward.7} parent=0 // pred_check
    _
  $region35: #{bottleneck_forward.7} parent=0 // pred_check_branch
    %916 = sbr.rel (0) target = $region37
  $region36: #{bottleneck_forward.7} parent=0 // pred_region
    _
  $region37: #{bottleneck_forward.7} parent=0 // pred_fallthru
    _
  // Predicated region
  $region38: #{bottleneck_forward.7} parent=0 // pred_check
    _
  $region39: #{bottleneck_forward.7} parent=0 // pred_check_branch
    %918 = sbr.rel (0) target = $region41
  $region40: #{bottleneck_forward.7} parent=0 // pred_region
    _
  $region41: #{bottleneck_forward.7} parent=0 // pred_fallthru
    _
  // Predicated region
  $region42: #{bottleneck_forward.7} parent=0 // pred_check
    _
  $region43: #{bottleneck_forward.7} parent=0 // pred_check_branch
    %920 = sbr.rel (0) target = $region45
  $region44: #{bottleneck_forward.7} parent=0 // pred_region
    _
  $region45: #{bottleneck_forward.7} parent=0 // pred_fallthru
    _

// kernel: bottleneck_forward.10
$region0: #{bottleneck_forward.10}
  #allocation0 [shape = 'u32[]', space=smem, size = 0x4, offset = 0x4, fixed_abs, tag = 'smem constant byte address 0x4 - core index']
  #allocation1 [shape = 'u32[72,128]{1,0:T(1,128)}', space=vmem, size = 0x9000, scoped, tag = 'internal scratch']
  %s0 = inlined_call_operand.vmem [shape: f32[128,128], index: 0, kind: input, shape index: {}]
  %s1 = inlined_call_operand.vmem [shape: f32[1,128], index: 1, kind: input, shape index: {}]
  %s2 = inlined_call_operand.vmem [shape: f32[1,128], index: 2, kind: input, shape index: {}]
  %s3 = inlined_call_operand.vmem [shape: f32[128,128], index: 3, kind: output, shape index: {}]
  %s4 = sld [smem:[#allocation0]]
  $region22: #{bottleneck_forward.10} parent=0
    _
  %s6 = ssub.s32 1, %s4
  %s7 = scalar_select 0, %s6, %s4
  // Predicated region
  $region2: #{bottleneck_forward.10} parent=0 // pred_check
    _
  $region3: #{bottleneck_forward.10} parent=0 // pred_check_branch
    %9 = sbr.rel (0) target = $region5
  $region4: #{bottleneck_forward.10} parent=0 // pred_region
    _
  $region5: #{bottleneck_forward.10} parent=0 // pred_fallthru
    _
  // Predicated region
  $region6: #{bottleneck_forward.10} parent=0 // pred_check
    _
  $region7: #{bottleneck_forward.10} parent=0 // pred_check_branch
    %11 = sbr.rel (0) target = $region9
  $region8: #{bottleneck_forward.10} parent=0 // pred_region
    _
  $region9: #{bottleneck_forward.10} parent=0 // pred_fallthru
    _
  // Predicated region
  $region10: #{bottleneck_forward.10} parent=0 // pred_check
    _
  $region11: #{bottleneck_forward.10} parent=0 // pred_check_branch
    %13 = sbr.rel (0) target = $region13
  $region12: #{bottleneck_forward.10} parent=0 // pred_region
    _
  $region13: #{bottleneck_forward.10} parent=0 // pred_fallthru
    _
  %v14 = vld [vmem:[%s0] sm:$0xff]
  %v15 = vld [vmem:[%s0 + $0x8] sm:$0xff]
  %v16 = vld [vmem:[%s0 + $0x10] sm:$0xff]
  %v17 = vld [vmem:[%s0 + $0x18] sm:$0xff]
  %v18 = vld [vmem:[%s0 + $0x20] sm:$0xff]
  %v19 = vld [vmem:[%s0 + $0x28] sm:$0xff]
  %v20 = vld [vmem:[%s0 + $0x30] sm:$0xff]
  %v21 = vld [vmem:[%s0 + $0x38] sm:$0xff]
  %v22 = vld [vmem:[%s0 + $0x40] sm:$0xff]
  %v23 = vld [vmem:[%s0 + $0x48] sm:$0xff]
  %v24 = vld [vmem:[%s0 + $0x50] sm:$0xff]
  %v25 = vld [vmem:[%s0 + $0x58] sm:$0xff]
  %v26 = vld [vmem:[%s0 + $0x60] sm:$0xff]
  %v27 = vld [vmem:[%s0 + $0x68] sm:$0xff]
  %v28 = vld [vmem:[%s0 + $0x70] sm:$0xff]
  %v29 = vld [vmem:[%s0 + $0x78] sm:$0xff]
  %v30 = vld [vmem:[%s1] sm:$0x1]
  %v32 = vperm.slane %v30, 0
  %v34 = vmul.f32 %v14, %v32
  %v35 = vmul.f32 %v15, %v32
  %v36 = vmul.f32 %v16, %v32
  %v37 = vmul.f32 %v17, %v32
  %v38 = vmul.f32 %v18, %v32
  %v39 = vmul.f32 %v19, %v32
  %v40 = vmul.f32 %v20, %v32
  %v41 = vmul.f32 %v21, %v32
  %v42 = vmul.f32 %v22, %v32
  %v43 = vmul.f32 %v23, %v32
  %v44 = vmul.f32 %v24, %v32
  %v45 = vmul.f32 %v25, %v32
  %v46 = vmul.f32 %v26, %v32
  %v47 = vmul.f32 %v27, %v32
  %v48 = vmul.f32 %v28, %v32
  %v49 = vmul.f32 %v29, %v32
  %v50 = vld [vmem:[%s2] sm:$0x1]
  %v52 = vperm.slane %v50, 0
  %v54 = vadd.f32 %v34, %v52
  %v55 = vadd.f32 %v35, %v52
  %v56 = vadd.f32 %v36, %v52
  %v57 = vadd.f32 %v37, %v52
  %v58 = vadd.f32 %v38, %v52
  %v59 = vadd.f32 %v39, %v52
  %v60 = vadd.f32 %v40, %v52
  %v61 = vadd.f32 %v41, %v52
  %v62 = vadd.f32 %v42, %v52
  %v63 = vadd.f32 %v43, %v52
  %v64 = vadd.f32 %v44, %v52
  %v65 = vadd.f32 %v45, %v52
  %v66 = vadd.f32 %v46, %v52
  %v67 = vadd.f32 %v47, %v52
  %v68 = vadd.f32 %v48, %v52
  %v69 = vadd.f32 %v49, %v52
  %v70 = vmax.f32 %v54, 0.0
  %v71 = vmax.f32 %v55, 0.0
  %v72 = vmax.f32 %v56, 0.0
  %v73 = vmax.f32 %v57, 0.0
  %v74 = vmax.f32 %v58, 0.0
  %v75 = vmax.f32 %v59, 0.0
  %v76 = vmax.f32 %v60, 0.0
  %v77 = vmax.f32 %v61, 0.0
  %v78 = vmax.f32 %v62, 0.0
  %v79 = vmax.f32 %v63, 0.0
  %v80 = vmax.f32 %v64, 0.0
  %v81 = vmax.f32 %v65, 0.0
  %v82 = vmax.f32 %v66, 0.0
  %v83 = vmax.f32 %v67, 0.0
  %v84 = vmax.f32 %v68, 0.0
  %v85 = vmax.f32 %v69, 0.0
  %86 = vst [vmem:[%s3] sm:$0xff] %v70
  %87 = vst [vmem:[%s3 + $0x8] sm:$0xff] %v71
  %88 = vst [vmem:[%s3 + $0x10] sm:$0xff] %v72
  %89 = vst [vmem:[%s3 + $0x18] sm:$0xff] %v73
  %90 = vst [vmem:[%s3 + $0x20] sm:$0xff] %v74
  %91 = vst [vmem:[%s3 + $0x28] sm:$0xff] %v75
  %92 = vst [vmem:[%s3 + $0x30] sm:$0xff] %v76
  %93 = vst [vmem:[%s3 + $0x38] sm:$0xff] %v77
  %94 = vst [vmem:[%s3 + $0x40] sm:$0xff] %v78
  %95 = vst [vmem:[%s3 + $0x48] sm:$0xff] %v79
  %96 = vst [vmem:[%s3 + $0x50] sm:$0xff] %v80
  %97 = vst [vmem:[%s3 + $0x58] sm:$0xff] %v81
  %98 = vst [vmem:[%s3 + $0x60] sm:$0xff] %v82
  %99 = vst [vmem:[%s3 + $0x68] sm:$0xff] %v83
  %100 = vst [vmem:[%s3 + $0x70] sm:$0xff] %v84
  %101 = vst [vmem:[%s3 + $0x78] sm:$0xff] %v85
  // Predicated region
  $region14: #{bottleneck_forward.10} parent=0 // pred_check
    _
  $region15: #{bottleneck_forward.10} parent=0 // pred_check_branch
    %103 = sbr.rel (0) target = $region17
  $region16: #{bottleneck_forward.10} parent=0 // pred_region
    _
  $region17: #{bottleneck_forward.10} parent=0 // pred_fallthru
    _
  // Predicated region
  $region18: #{bottleneck_forward.10} parent=0 // pred_check
    _
  $region19: #{bottleneck_forward.10} parent=0 // pred_check_branch
    %105 = sbr.rel (0) target = $region21
  $region20: #{bottleneck_forward.10} parent=0 // pred_region
    _
  $region21: #{bottleneck_forward.10} parent=0 // pred_fallthru
    _

// kernel: bottleneck_forward.9
$region0: #{bottleneck_forward.9}
  #allocation0 [shape = 'u32[]', space=smem, size = 0x4, offset = 0x4, fixed_abs, tag = 'smem constant byte address 0x4 - core index']
  #allocation1 [shape = 'u32[72,128]{1,0:T(1,128)}', space=vmem, size = 0x9000, scoped, tag = 'internal scratch']
  #allocation2 [shape = 'f32[128,128]{1,0:T(8,128)}', space=vmem, size = 0x10000, scoped, tag = 'scratch operand']
  %s0 = inlined_call_operand.vmem [shape: f32[128,128], index: 0, kind: input, shape index: {}]
  %s1 = inlined_call_operand.vmem [shape: f32[128,128], index: 1, kind: input, shape index: {}]
  %s2 = inlined_call_operand.vmem [shape: f32[128,128], index: 2, kind: output, shape index: {0}]
  %s3 = inlined_call_operand.vmem [shape: f32[1,128], index: 3, kind: output, shape index: {1}]
  %s4 = inlined_call_operand.vmem [shape: f32[1,128], index: 4, kind: output, shape index: {2}]
  %5 = xla_tuple %s2, %s3, %s4
  %s6 = sld [smem:[#allocation0]]
  $region46: #{bottleneck_forward.9} parent=0
    _
  %s8 = ssub.s32 1, %s6
  %s9 = scalar_select 0, %s8, %s6
  // Predicated region
  $region2: #{bottleneck_forward.9} parent=0 // pred_check
    _
  $region3: #{bottleneck_forward.9} parent=0 // pred_check_branch
    %11 = sbr.rel (0) target = $region5
  $region4: #{bottleneck_forward.9} parent=0 // pred_region
    _
  $region5: #{bottleneck_forward.9} parent=0 // pred_fallthru
    _
  // Predicated region
  $region6: #{bottleneck_forward.9} parent=0 // pred_check
    _
  $region7: #{bottleneck_forward.9} parent=0 // pred_check_branch
    %13 = sbr.rel (0) target = $region9
  $region8: #{bottleneck_forward.9} parent=0 // pred_region
    _
  $region9: #{bottleneck_forward.9} parent=0 // pred_fallthru
    _
  %p14 = scmp.eq.s32.totalorder 0, 0
  // Predicated region
  $region10: #{bottleneck_forward.9} parent=0 // pred_check
    %p15 = pneg %p14
  $region11: #{bottleneck_forward.9} parent=0 // pred_check_branch
    %17 = sbr.rel (%p15) target = $region13
  $region12: #{bottleneck_forward.9} parent=0 // pred_region
    %18 = vst [vmem:[#allocation2] sm:$0xff] 0.0
    %19 = vst [vmem:[#allocation2 + $0x8] sm:$0xff] 0.0
    %20 = vst [vmem:[#allocation2 + $0x10] sm:$0xff] 0.0
    %21 = vst [vmem:[#allocation2 + $0x18] sm:$0xff] 0.0
    %22 = vst [vmem:[#allocation2 + $0x20] sm:$0xff] 0.0
    %23 = vst [vmem:[#allocation2 + $0x28] sm:$0xff] 0.0
    %24 = vst [vmem:[#allocation2 + $0x30] sm:$0xff] 0.0
    %25 = vst [vmem:[#allocation2 + $0x38] sm:$0xff] 0.0
    %26 = vst [vmem:[#allocation2 + $0x40] sm:$0xff] 0.0
    %27 = vst [vmem:[#allocation2 + $0x48] sm:$0xff] 0.0
    %28 = vst [vmem:[#allocation2 + $0x50] sm:$0xff] 0.0
    %29 = vst [vmem:[#allocation2 + $0x58] sm:$0xff] 0.0
    %30 = vst [vmem:[#allocation2 + $0x60] sm:$0xff] 0.0
    %31 = vst [vmem:[#allocation2 + $0x68] sm:$0xff] 0.0
    %32 = vst [vmem:[#allocation2 + $0x70] sm:$0xff] 0.0
    %33 = vst [vmem:[#allocation2 + $0x78] sm:$0xff] 0.0
  $region13: #{bottleneck_forward.9} parent=0 // pred_fallthru
    _
  %v34 = vld [vmem:[#allocation2] sm:$0xff]
  %v35 = vld [vmem:[#allocation2 + $0x8] sm:$0xff]
  %v36 = vld [vmem:[#allocation2 + $0x10] sm:$0xff]
  %v37 = vld [vmem:[#allocation2 + $0x18] sm:$0xff]
  %v38 = vld [vmem:[#allocation2 + $0x20] sm:$0xff]
  %v39 = vld [vmem:[#allocation2 + $0x28] sm:$0xff]
  %v40 = vld [vmem:[#allocation2 + $0x30] sm:$0xff]
  %v41 = vld [vmem:[#allocation2 + $0x38] sm:$0xff]
  %v42 = vld [vmem:[#allocation2 + $0x40] sm:$0xff]
  %v43 = vld [vmem:[#allocation2 + $0x48] sm:$0xff]
  %v44 = vld [vmem:[#allocation2 + $0x50] sm:$0xff]
  %v45 = vld [vmem:[#allocation2 + $0x58] sm:$0xff]
  %v46 = vld [vmem:[#allocation2 + $0x60] sm:$0xff]
  %v47 = vld [vmem:[#allocation2 + $0x68] sm:$0xff]
  %v48 = vld [vmem:[#allocation2 + $0x70] sm:$0xff]
  %v49 = vld [vmem:[#allocation2 + $0x78] sm:$0xff]
  %v50 = vld [vmem:[%s0] sm:$0xff]
  %v51 = vld [vmem:[%s0 + $0x8] sm:$0xff]
  %v52 = vld [vmem:[%s0 + $0x10] sm:$0xff]
  %v53 = vld [vmem:[%s0 + $0x18] sm:$0xff]
  %v54 = vld [vmem:[%s0 + $0x20] sm:$0xff]
  %v55 = vld [vmem:[%s0 + $0x28] sm:$0xff]
  %v56 = vld [vmem:[%s0 + $0x30] sm:$0xff]
  %v57 = vld [vmem:[%s0 + $0x38] sm:$0xff]
  %v58 = vld [vmem:[%s0 + $0x40] sm:$0xff]
  %v59 = vld [vmem:[%s0 + $0x48] sm:$0xff]
  %v60 = vld [vmem:[%s0 + $0x50] sm:$0xff]
  %v61 = vld [vmem:[%s0 + $0x58] sm:$0xff]
  %v62 = vld [vmem:[%s0 + $0x60] sm:$0xff]
  %v63 = vld [vmem:[%s0 + $0x68] sm:$0xff]
  %v64 = vld [vmem:[%s0 + $0x70] sm:$0xff]
  %v65 = vld [vmem:[%s0 + $0x78] sm:$0xff]
  %v66 = vld [vmem:[%s1] sm:$0xff]
  %v67 = vld [vmem:[%s1 + $0x8] sm:$0xff]
  %v68 = vld [vmem:[%s1 + $0x10] sm:$0xff]
  %v69 = vld [vmem:[%s1 + $0x18] sm:$0xff]
  %v70 = vld [vmem:[%s1 + $0x20] sm:$0xff]
  %v71 = vld [vmem:[%s1 + $0x28] sm:$0xff]
  %v72 = vld [vmem:[%s1 + $0x30] sm:$0xff]
  %v73 = vld [vmem:[%s1 + $0x38] sm:$0xff]
  %v74 = vld [vmem:[%s1 + $0x40] sm:$0xff]
  %v75 = vld [vmem:[%s1 + $0x48] sm:$0xff]
  %v76 = vld [vmem:[%s1 + $0x50] sm:$0xff]
  %v77 = vld [vmem:[%s1 + $0x58] sm:$0xff]
  %v78 = vld [vmem:[%s1 + $0x60] sm:$0xff]
  %v79 = vld [vmem:[%s1 + $0x68] sm:$0xff]
  %v80 = vld [vmem:[%s1 + $0x70] sm:$0xff]
  %v81 = vld [vmem:[%s1 + $0x78] sm:$0xff]
  %82 = vmatpush.msra.mxu0 %v81
  %83 = vmatpush.msra.mxu0 %v80
  %84 = vmatpush.msra.mxu0 %v79
  %85 = vmatpush.msra.mxu0 %v78
  %86 = vmatpush.msra.mxu0 %v77
  %87 = vmatpush.msra.mxu0 %v76
  %88 = vmatpush.msra.mxu0 %v75
  %89 = vmatpush.msra.mxu0 %v74
  %90 = vmatpush.msra.mxu0 %v73
  %91 = vmatpush.msra.mxu0 %v72
  %92 = vmatpush.msra.mxu0 %v71
  %93 = vmatpush.msra.mxu0 %v70
  %94 = vmatpush.msra.mxu0 %v69
  %95 = vmatpush.msra.mxu0 %v68
  %96 = vmatpush.msra.mxu0 %v67
  %97 = vmatpush.msra.mxu0 %v66
  %98 = vmatmul.f32.gmra.mxu0 %v50
  %v99 = vpop.f32.mrf.mxu0
  %v100 = vadd.f32 0.0, %v99
  %101 = vmatmul.f32.gmra.mxu0 %v51
  %v102 = vpop.f32.mrf.mxu0
  %v103 = vadd.f32 0.0, %v102
  %104 = vmatmul.f32.gmra.mxu0 %v52
  %v105 = vpop.f32.mrf.mxu0
  %v106 = vadd.f32 0.0, %v105
  %107 = vmatmul.f32.gmra.mxu0 %v53
  %v108 = vpop.f32.mrf.mxu0
  %v109 = vadd.f32 0.0, %v108
  %110 = vmatmul.f32.gmra.mxu0 %v54
  %v111 = vpop.f32.mrf.mxu0
  %v112 = vadd.f32 0.0, %v111
  %113 = vmatmul.f32.gmra.mxu0 %v55
  %v114 = vpop.f32.mrf.mxu0
  %v115 = vadd.f32 0.0, %v114
  %116 = vmatmul.f32.gmra.mxu0 %v56
  %v117 = vpop.f32.mrf.mxu0
  %v118 = vadd.f32 0.0, %v117
  %119 = vmatmul.f32.gmra.mxu0 %v57
  %v120 = vpop.f32.mrf.mxu0
  %v121 = vadd.f32 0.0, %v120
  %122 = vmatmul.f32.gmra.mxu0 %v58
  %v123 = vpop.f32.mrf.mxu0
  %v124 = vadd.f32 0.0, %v123
  %125 = vmatmul.f32.gmra.mxu0 %v59
  %v126 = vpop.f32.mrf.mxu0
  %v127 = vadd.f32 0.0, %v126
  %128 = vmatmul.f32.gmra.mxu0 %v60
  %v129 = vpop.f32.mrf.mxu0
  %v130 = vadd.f32 0.0, %v129
  %131 = vmatmul.f32.gmra.mxu0 %v61
  %v132 = vpop.f32.mrf.mxu0
  %v133 = vadd.f32 0.0, %v132
  %134 = vmatmul.f32.gmra.mxu0 %v62
  %v135 = vpop.f32.mrf.mxu0
  %v136 = vadd.f32 0.0, %v135
  %137 = vmatmul.f32.gmra.mxu0 %v63
  %v138 = vpop.f32.mrf.mxu0
  %v139 = vadd.f32 0.0, %v138
  %140 = vmatmul.f32.gmra.mxu0 %v64
  %v141 = vpop.f32.mrf.mxu0
  %v142 = vadd.f32 0.0, %v141
  %143 = vmatmul.f32.gmra.mxu0 %v65
  %v144 = vpop.f32.mrf.mxu0
  %v145 = vadd.f32 0.0, %v144
  %146 = vdwg.mxu0
  %v147 = vadd.f32 %v34, %v100
  %v148 = vadd.f32 %v35, %v103
  %v149 = vadd.f32 %v36, %v106
  %v150 = vadd.f32 %v37, %v109
  %v151 = vadd.f32 %v38, %v112
  %v152 = vadd.f32 %v39, %v115
  %v153 = vadd.f32 %v40, %v118
  %v154 = vadd.f32 %v41, %v121
  %v155 = vadd.f32 %v42, %v124
  %v156 = vadd.f32 %v43, %v127
  %v157 = vadd.f32 %v44, %v130
  %v158 = vadd.f32 %v45, %v133
  %v159 = vadd.f32 %v46, %v136
  %v160 = vadd.f32 %v47, %v139
  %v161 = vadd.f32 %v48, %v142
  %v162 = vadd.f32 %v49, %v145
  %163 = vst [vmem:[#allocation2] sm:$0xff] %v147
  %164 = vst [vmem:[#allocation2 + $0x8] sm:$0xff] %v148
  %165 = vst [vmem:[#allocation2 + $0x10] sm:$0xff] %v149
  %166 = vst [vmem:[#allocation2 + $0x18] sm:$0xff] %v150
  %167 = vst [vmem:[#allocation2 + $0x20] sm:$0xff] %v151
  %168 = vst [vmem:[#allocation2 + $0x28] sm:$0xff] %v152
  %169 = vst [vmem:[#allocation2 + $0x30] sm:$0xff] %v153
  %170 = vst [vmem:[#allocation2 + $0x38] sm:$0xff] %v154
  %171 = vst [vmem:[#allocation2 + $0x40] sm:$0xff] %v155
  %172 = vst [vmem:[#allocation2 + $0x48] sm:$0xff] %v156
  %173 = vst [vmem:[#allocation2 + $0x50] sm:$0xff] %v157
  %174 = vst [vmem:[#allocation2 + $0x58] sm:$0xff] %v158
  %175 = vst [vmem:[#allocation2 + $0x60] sm:$0xff] %v159
  %176 = vst [vmem:[#allocation2 + $0x68] sm:$0xff] %v160
  %177 = vst [vmem:[#allocation2 + $0x70] sm:$0xff] %v161
  %178 = vst [vmem:[#allocation2 + $0x78] sm:$0xff] %v162
  %p179 = scmp.eq.s32.totalorder 0, 0
  %p180 = pnand %p14, %p179
  %p181 = pneg %p180
  // Predicated region
  $region14: #{bottleneck_forward.9} parent=0 // pred_check
    _
  $region15: #{bottleneck_forward.9} parent=0 // pred_check_branch
    %183 = sbr.rel (%p180) target = $region17
  $region16: #{bottleneck_forward.9} parent=0 // pred_region
    %184 = vst [vmem:[%s3] sm:$0x1] 0.0
    %185 = vst [vmem:[%s4] sm:$0x1] 0.0
  $region17: #{bottleneck_forward.9} parent=0 // pred_fallthru
    _
  // Predicated region
  $region18: #{bottleneck_forward.9} parent=0 // pred_check
    %p186 = pneg %p14
  $region19: #{bottleneck_forward.9} parent=0 // pred_check_branch
    %188 = sbr.rel (%p186) target = $region21
  $region20: #{bottleneck_forward.9} parent=0 // pred_region
    %v189 = vld [vmem:[#allocation2] sm:$0xff]
    %v190 = vld [vmem:[#allocation2 + $0x8] sm:$0xff]
    %v191 = vld [vmem:[#allocation2 + $0x10] sm:$0xff]
    %v192 = vld [vmem:[#allocation2 + $0x18] sm:$0xff]
    %v193 = vld [vmem:[#allocation2 + $0x20] sm:$0xff]
    %v194 = vld [vmem:[#allocation2 + $0x28] sm:$0xff]
    %v195 = vld [vmem:[#allocation2 + $0x30] sm:$0xff]
    %v196 = vld [vmem:[#allocation2 + $0x38] sm:$0xff]
    %v197 = vld [vmem:[#allocation2 + $0x40] sm:$0xff]
    %v198 = vld [vmem:[#allocation2 + $0x48] sm:$0xff]
    %v199 = vld [vmem:[#allocation2 + $0x50] sm:$0xff]
    %v200 = vld [vmem:[#allocation2 + $0x58] sm:$0xff]
    %v201 = vld [vmem:[#allocation2 + $0x60] sm:$0xff]
    %v202 = vld [vmem:[#allocation2 + $0x68] sm:$0xff]
    %v203 = vld [vmem:[#allocation2 + $0x70] sm:$0xff]
    %v204 = vld [vmem:[#allocation2 + $0x78] sm:$0xff]
    %205 = vst [vmem:[%s2] sm:$0xff] %v189
    %206 = vst [vmem:[%s2 + $0x8] sm:$0xff] %v190
    %207 = vst [vmem:[%s2 + $0x10] sm:$0xff] %v191
    %208 = vst [vmem:[%s2 + $0x18] sm:$0xff] %v192
    %209 = vst [vmem:[%s2 + $0x20] sm:$0xff] %v193
    %210 = vst [vmem:[%s2 + $0x28] sm:$0xff] %v194
    %211 = vst [vmem:[%s2 + $0x30] sm:$0xff] %v195
    %212 = vst [vmem:[%s2 + $0x38] sm:$0xff] %v196
    %213 = vst [vmem:[%s2 + $0x40] sm:$0xff] %v197
    %214 = vst [vmem:[%s2 + $0x48] sm:$0xff] %v198
    %215 = vst [vmem:[%s2 + $0x50] sm:$0xff] %v199
    %216 = vst [vmem:[%s2 + $0x58] sm:$0xff] %v200
    %217 = vst [vmem:[%s2 + $0x60] sm:$0xff] %v201
    %218 = vst [vmem:[%s2 + $0x68] sm:$0xff] %v202
    %219 = vst [vmem:[%s2 + $0x70] sm:$0xff] %v203
    %220 = vst [vmem:[%s2 + $0x78] sm:$0xff] %v204
    %v221 = vld [vmem:[%s3] sm:$0x1]
    %v222 = vadd.f32 %v189, %v190
    %v223 = vadd.f32 %v222, %v191
    %v224 = vadd.f32 %v223, %v192
    %v225 = vadd.f32 %v224, %v193
    %v226 = vadd.f32 %v225, %v194
    %v227 = vadd.f32 %v226, %v195
    %v228 = vadd.f32 %v227, %v196
    %v229 = vadd.f32 %v228, %v197
    %v230 = vadd.f32 %v229, %v198
    %v231 = vadd.f32 %v230, %v199
    %v232 = vadd.f32 %v231, %v200
    %v233 = vadd.f32 %v232, %v201
    %v234 = vadd.f32 %v233, %v202
    %v235 = vadd.f32 %v234, %v203
    %v236 = vadd.f32 %v235, %v204
    %v237 = vrot.slane %v236, 4
    %v238 = vadd.f32 %v236, %v237
    %v239 = vrot.slane %v238, 2
    %v240 = vadd.f32 %v238, %v239
    %v241 = vrot.slane %v240, 1
    %v242 = vadd.f32 %v240, %v241
    %v243 = vadd.f32 %v221, %v242
    %244 = vst [vmem:[%s3] sm:$0x1] %v243
    %v245 = vld [vmem:[%s4] sm:$0x1]
    %v246 = vmul.f32 %v189, %v189
    %v247 = vmul.f32 %v190, %v190
    %v248 = vmul.f32 %v191, %v191
    %v249 = vmul.f32 %v192, %v192
    %v250 = vmul.f32 %v193, %v193
    %v251 = vmul.f32 %v194, %v194
    %v252 = vmul.f32 %v195, %v195
    %v253 = vmul.f32 %v196, %v196
    %v254 = vmul.f32 %v197, %v197
    %v255 = vmul.f32 %v198, %v198
    %v256 = vmul.f32 %v199, %v199
    %v257 = vmul.f32 %v200, %v200
    %v258 = vmul.f32 %v201, %v201
    %v259 = vmul.f32 %v202, %v202
    %v260 = vmul.f32 %v203, %v203
    %v261 = vmul.f32 %v204, %v204
    %v262 = vadd.f32 %v246, %v247
    %v263 = vadd.f32 %v262, %v248
    %v264 = vadd.f32 %v263, %v249
    %v265 = vadd.f32 %v264, %v250
    %v266 = vadd.f32 %v265, %v251
    %v267 = vadd.f32 %v266, %v252
    %v268 = vadd.f32 %v267, %v253
    %v269 = vadd.f32 %v268, %v254
    %v270 = vadd.f32 %v269, %v255
    %v271 = vadd.f32 %v270, %v256
    %v272 = vadd.f32 %v271, %v257
    %v273 = vadd.f32 %v272, %v258
    %v274 = vadd.f32 %v273, %v259
    %v275 = vadd.f32 %v274, %v260
    %v276 = vadd.f32 %v275, %v261
    %v277 = vrot.slane %v276, 4
    %v278 = vadd.f32 %v276, %v277
    %v279 = vrot.slane %v278, 2
    %v280 = vadd.f32 %v278, %v279
    %v281 = vrot.slane %v280, 1
    %v282 = vadd.f32 %v280, %v281
    %v283 = vadd.f32 %v245, %v282
    %284 = vst [vmem:[%s4] sm:$0x1] %v283
  $region21: #{bottleneck_forward.9} parent=0 // pred_fallthru
    _
  // Predicated region
  $region22: #{bottleneck_forward.9} parent=0 // pred_check
    _
  $region23: #{bottleneck_forward.9} parent=0 // pred_check_branch
    %286 = sbr.rel (0) target = $region25
  $region24: #{bottleneck_forward.9} parent=0 // pred_region
    _
  $region25: #{bottleneck_forward.9} parent=0 // pred_fallthru
    _
  // Predicated region
  $region26: #{bottleneck_forward.9} parent=0 // pred_check
    _
  $region27: #{bottleneck_forward.9} parent=0 // pred_check_branch
    %288 = sbr.rel (0) target = $region29
  $region28: #{bottleneck_forward.9} parent=0 // pred_region
    _
  $region29: #{bottleneck_forward.9} parent=0 // pred_fallthru
    _
  // Predicated region
  $region30: #{bottleneck_forward.9} parent=0 // pred_check
    _
  $region31: #{bottleneck_forward.9} parent=0 // pred_check_branch
    %290 = sbr.rel (0) target = $region33
  $region32: #{bottleneck_forward.9} parent=0 // pred_region
    _
  $region33: #{bottleneck_forward.9} parent=0 // pred_fallthru
    _
  // Predicated region
  $region34: #{bottleneck_forward.9} parent=0 // pred_check
    _
  $region35: #{bottleneck_forward.9} parent=0 // pred_check_branch
    %292 = sbr.rel (0) target = $region37
  $region36: #{bottleneck_forward.9} parent=0 // pred_region
    _
  $region37: #{bottleneck_forward.9} parent=0 // pred_fallthru
    _
  // Predicated region
  $region38: #{bottleneck_forward.9} parent=0 // pred_check
    _
  $region39: #{bottleneck_forward.9} parent=0 // pred_check_branch
    %294 = sbr.rel (0) target = $region41
  $region40: #{bottleneck_forward.9} parent=0 // pred_region
    _
  $region41: #{bottleneck_forward.9} parent=0 // pred_fallthru
    _
  // Predicated region
  $region42: #{bottleneck_forward.9} parent=0 // pred_check
    _
  $region43: #{bottleneck_forward.9} parent=0 // pred_check_branch
    %296 = sbr.rel (0) target = $region45
  $region44: #{bottleneck_forward.9} parent=0 // pred_region
    _
  $region45: #{bottleneck_forward.9} parent=0 // pred_fallthru
    _

// kernel: bottleneck_forward.13
$region0: #{bottleneck_forward.13}
  #allocation0 [shape = 'u32[]', space=smem, size = 0x4, offset = 0x4, fixed_abs, tag = 'smem constant byte address 0x4 - core index']
  #allocation1 [shape = 'u32[72,128]{1,0:T(1,128)}', space=vmem, size = 0x9000, scoped, tag = 'internal scratch']
  %s0 = inlined_call_operand.vmem [shape: f32[128,128], index: 0, kind: input, shape index: {}]
  %s1 = inlined_call_operand.vmem [shape: f32[1,128], index: 1, kind: input, shape index: {}]
  %s2 = inlined_call_operand.vmem [shape: f32[1,128], index: 2, kind: input, shape index: {}]
  %s3 = inlined_call_operand.vmem [shape: f32[128,128], index: 3, kind: input, shape index: {}]
  %s4 = inlined_call_operand.vmem [shape: f32[1,128], index: 4, kind: input, shape index: {}]
  %s5 = inlined_call_operand.vmem [shape: f32[1,128], index: 5, kind: input, shape index: {}]
  %s6 = inlined_call_operand.vmem [shape: f32[128,128], index: 6, kind: output, shape index: {}]
  %s7 = sld [smem:[#allocation0]]
  $region34: #{bottleneck_forward.13} parent=0
    _
  %s9 = ssub.s32 1, %s7
  %s10 = scalar_select 0, %s9, %s7
  // Predicated region
  $region2: #{bottleneck_forward.13} parent=0 // pred_check
    _
  $region3: #{bottleneck_forward.13} parent=0 // pred_check_branch
    %12 = sbr.rel (0) target = $region5
  $region4: #{bottleneck_forward.13} parent=0 // pred_region
    _
  $region5: #{bottleneck_forward.13} parent=0 // pred_fallthru
    _
  // Predicated region
  $region6: #{bottleneck_forward.13} parent=0 // pred_check
    _
  $region7: #{bottleneck_forward.13} parent=0 // pred_check_branch
    %14 = sbr.rel (0) target = $region9
  $region8: #{bottleneck_forward.13} parent=0 // pred_region
    _
  $region9: #{bottleneck_forward.13} parent=0 // pred_fallthru
    _
  // Predicated region
  $region10: #{bottleneck_forward.13} parent=0 // pred_check
    _
  $region11: #{bottleneck_forward.13} parent=0 // pred_check_branch
    %16 = sbr.rel (0) target = $region13
  $region12: #{bottleneck_forward.13} parent=0 // pred_region
    _
  $region13: #{bottleneck_forward.13} parent=0 // pred_fallthru
    _
  // Predicated region
  $region14: #{bottleneck_forward.13} parent=0 // pred_check
    _
  $region15: #{bottleneck_forward.13} parent=0 // pred_check_branch
    %18 = sbr.rel (0) target = $region17
  $region16: #{bottleneck_forward.13} parent=0 // pred_region
    _
  $region17: #{bottleneck_forward.13} parent=0 // pred_fallthru
    _
  // Predicated region
  $region18: #{bottleneck_forward.13} parent=0 // pred_check
    _
  $region19: #{bottleneck_forward.13} parent=0 // pred_check_branch
    %20 = sbr.rel (0) target = $region21
  $region20: #{bottleneck_forward.13} parent=0 // pred_region
    _
  $region21: #{bottleneck_forward.13} parent=0 // pred_fallthru
    _
  // Predicated region
  $region22: #{bottleneck_forward.13} parent=0 // pred_check
    _
  $region23: #{bottleneck_forward.13} parent=0 // pred_check_branch
    %22 = sbr.rel (0) target = $region25
  $region24: #{bottleneck_forward.13} parent=0 // pred_region
    _
  $region25: #{bottleneck_forward.13} parent=0 // pred_fallthru
    _
  %v23 = vld [vmem:[%s0] sm:$0xff]
  %v24 = vld [vmem:[%s0 + $0x8] sm:$0xff]
  %v25 = vld [vmem:[%s0 + $0x10] sm:$0xff]
  %v26 = vld [vmem:[%s0 + $0x18] sm:$0xff]
  %v27 = vld [vmem:[%s0 + $0x20] sm:$0xff]
  %v28 = vld [vmem:[%s0 + $0x28] sm:$0xff]
  %v29 = vld [vmem:[%s0 + $0x30] sm:$0xff]
  %v30 = vld [vmem:[%s0 + $0x38] sm:$0xff]
  %v31 = vld [vmem:[%s0 + $0x40] sm:$0xff]
  %v32 = vld [vmem:[%s0 + $0x48] sm:$0xff]
  %v33 = vld [vmem:[%s0 + $0x50] sm:$0xff]
  %v34 = vld [vmem:[%s0 + $0x58] sm:$0xff]
  %v35 = vld [vmem:[%s0 + $0x60] sm:$0xff]
  %v36 = vld [vmem:[%s0 + $0x68] sm:$0xff]
  %v37 = vld [vmem:[%s0 + $0x70] sm:$0xff]
  %v38 = vld [vmem:[%s0 + $0x78] sm:$0xff]
  %v39 = vld [vmem:[%s1] sm:$0x1]
  %v41 = vperm.slane %v39, 0
  %v43 = vmul.f32 %v23, %v41
  %v44 = vmul.f32 %v24, %v41
  %v45 = vmul.f32 %v25, %v41
  %v46 = vmul.f32 %v26, %v41
  %v47 = vmul.f32 %v27, %v41
  %v48 = vmul.f32 %v28, %v41
  %v49 = vmul.f32 %v29, %v41
  %v50 = vmul.f32 %v30, %v41
  %v51 = vmul.f32 %v31, %v41
  %v52 = vmul.f32 %v32, %v41
  %v53 = vmul.f32 %v33, %v41
  %v54 = vmul.f32 %v34, %v41
  %v55 = vmul.f32 %v35, %v41
  %v56 = vmul.f32 %v36, %v41
  %v57 = vmul.f32 %v37, %v41
  %v58 = vmul.f32 %v38, %v41
  %v59 = vld [vmem:[%s2] sm:$0x1]
  %v61 = vperm.slane %v59, 0
  %v63 = vadd.f32 %v43, %v61
  %v64 = vadd.f32 %v44, %v61
  %v65 = vadd.f32 %v45, %v61
  %v66 = vadd.f32 %v46, %v61
  %v67 = vadd.f32 %v47, %v61
  %v68 = vadd.f32 %v48, %v61
  %v69 = vadd.f32 %v49, %v61
  %v70 = vadd.f32 %v50, %v61
  %v71 = vadd.f32 %v51, %v61
  %v72 = vadd.f32 %v52, %v61
  %v73 = vadd.f32 %v53, %v61
  %v74 = vadd.f32 %v54, %v61
  %v75 = vadd.f32 %v55, %v61
  %v76 = vadd.f32 %v56, %v61
  %v77 = vadd.f32 %v57, %v61
  %v78 = vadd.f32 %v58, %v61
  %v79 = vld [vmem:[%s3] sm:$0xff]
  %v80 = vld [vmem:[%s3 + $0x8] sm:$0xff]
  %v81 = vld [vmem:[%s3 + $0x10] sm:$0xff]
  %v82 = vld [vmem:[%s3 + $0x18] sm:$0xff]
  %v83 = vld [vmem:[%s3 + $0x20] sm:$0xff]
  %v84 = vld [vmem:[%s3 + $0x28] sm:$0xff]
  %v85 = vld [vmem:[%s3 + $0x30] sm:$0xff]
  %v86 = vld [vmem:[%s3 + $0x38] sm:$0xff]
  %v87 = vld [vmem:[%s3 + $0x40] sm:$0xff]
  %v88 = vld [vmem:[%s3 + $0x48] sm:$0xff]
  %v89 = vld [vmem:[%s3 + $0x50] sm:$0xff]
  %v90 = vld [vmem:[%s3 + $0x58] sm:$0xff]
  %v91 = vld [vmem:[%s3 + $0x60] sm:$0xff]
  %v92 = vld [vmem:[%s3 + $0x68] sm:$0xff]
  %v93 = vld [vmem:[%s3 + $0x70] sm:$0xff]
  %v94 = vld [vmem:[%s3 + $0x78] sm:$0xff]
  %v95 = vld [vmem:[%s4] sm:$0x1]
  %v97 = vperm.slane %v95, 0
  %v99 = vmul.f32 %v79, %v97
  %v100 = vmul.f32 %v80, %v97
  %v101 = vmul.f32 %v81, %v97
  %v102 = vmul.f32 %v82, %v97
  %v103 = vmul.f32 %v83, %v97
  %v104 = vmul.f32 %v84, %v97
  %v105 = vmul.f32 %v85, %v97
  %v106 = vmul.f32 %v86, %v97
  %v107 = vmul.f32 %v87, %v97
  %v108 = vmul.f32 %v88, %v97
  %v109 = vmul.f32 %v89, %v97
  %v110 = vmul.f32 %v90, %v97
  %v111 = vmul.f32 %v91, %v97
  %v112 = vmul.f32 %v92, %v97
  %v113 = vmul.f32 %v93, %v97
  %v114 = vmul.f32 %v94, %v97
  %v115 = vadd.f32 %v63, %v99
  %v116 = vadd.f32 %v64, %v100
  %v117 = vadd.f32 %v65, %v101
  %v118 = vadd.f32 %v66, %v102
  %v119 = vadd.f32 %v67, %v103
  %v120 = vadd.f32 %v68, %v104
  %v121 = vadd.f32 %v69, %v105
  %v122 = vadd.f32 %v70, %v106
  %v123 = vadd.f32 %v71, %v107
  %v124 = vadd.f32 %v72, %v108
  %v125 = vadd.f32 %v73, %v109
  %v126 = vadd.f32 %v74, %v110
  %v127 = vadd.f32 %v75, %v111
  %v128 = vadd.f32 %v76, %v112
  %v129 = vadd.f32 %v77, %v113
  %v130 = vadd.f32 %v78, %v114
  %v131 = vld [vmem:[%s5] sm:$0x1]
  %v133 = vperm.slane %v131, 0
  %v135 = vadd.f32 %v115, %v133
  %v136 = vadd.f32 %v116, %v133
  %v137 = vadd.f32 %v117, %v133
  %v138 = vadd.f32 %v118, %v133
  %v139 = vadd.f32 %v119, %v133
  %v140 = vadd.f32 %v120, %v133
  %v141 = vadd.f32 %v121, %v133
  %v142 = vadd.f32 %v122, %v133
  %v143 = vadd.f32 %v123, %v133
  %v144 = vadd.f32 %v124, %v133
  %v145 = vadd.f32 %v125, %v133
  %v146 = vadd.f32 %v126, %v133
  %v147 = vadd.f32 %v127, %v133
  %v148 = vadd.f32 %v128, %v133
  %v149 = vadd.f32 %v129, %v133
  %v150 = vadd.f32 %v130, %v133
  %v151 = vmax.f32 %v135, 0.0
  %v152 = vmax.f32 %v136, 0.0
  %v153 = vmax.f32 %v137, 0.0
  %v154 = vmax.f32 %v138, 0.0
  %v155 = vmax.f32 %v139, 0.0
  %v156 = vmax.f32 %v140, 0.0
  %v157 = vmax.f32 %v141, 0.0
  %v158 = vmax.f32 %v142, 0.0
  %v159 = vmax.f32 %v143, 0.0
  %v160 = vmax.f32 %v144, 0.0
  %v161 = vmax.f32 %v145, 0.0
  %v162 = vmax.f32 %v146, 0.0
  %v163 = vmax.f32 %v147, 0.0
  %v164 = vmax.f32 %v148, 0.0
  %v165 = vmax.f32 %v149, 0.0
  %v166 = vmax.f32 %v150, 0.0
  %167 = vst [vmem:[%s6] sm:$0xff] %v151
  %168 = vst [vmem:[%s6 + $0x8] sm:$0xff] %v152
  %169 = vst [vmem:[%s6 + $0x10] sm:$0xff] %v153
  %170 = vst [vmem:[%s6 + $0x18] sm:$0xff] %v154
  %171 = vst [vmem:[%s6 + $0x20] sm:$0xff] %v155
  %172 = vst [vmem:[%s6 + $0x28] sm:$0xff] %v156
  %173 = vst [vmem:[%s6 + $0x30] sm:$0xff] %v157
  %174 = vst [vmem:[%s6 + $0x38] sm:$0xff] %v158
  %175 = vst [vmem:[%s6 + $0x40] sm:$0xff] %v159
  %176 = vst [vmem:[%s6 + $0x48] sm:$0xff] %v160
  %177 = vst [vmem:[%s6 + $0x50] sm:$0xff] %v161
  %178 = vst [vmem:[%s6 + $0x58] sm:$0xff] %v162
  %179 = vst [vmem:[%s6 + $0x60] sm:$0xff] %v163
  %180 = vst [vmem:[%s6 + $0x68] sm:$0xff] %v164
  %181 = vst [vmem:[%s6 + $0x70] sm:$0xff] %v165
  %182 = vst [vmem:[%s6 + $0x78] sm:$0xff] %v166
  // Predicated region
  $region26: #{bottleneck_forward.13} parent=0 // pred_check
    _
  $region27: #{bottleneck_forward.13} parent=0 // pred_check_branch
    %184 = sbr.rel (0) target = $region29
  $region28: #{bottleneck_forward.13} parent=0 // pred_region
    _
  $region29: #{bottleneck_forward.13} parent=0 // pred_fallthru
    _
  // Predicated region
  $region30: #{bottleneck_forward.13} parent=0 // pred_check
    _
  $region31: #{bottleneck_forward.13} parent=0 // pred_check_branch
    %186 = sbr.rel (0) target = $region33
  $region32: #{bottleneck_forward.13} parent=0 // pred_region
    _
  $region33: #{bottleneck_forward.13} parent=0 // pred_fallthru
    _

</llo_original>
